<compile_context>
chip_gen: v7x
topology: tpu7x:2x2x1
jax: 0.10.0
libtpu: 0.0.40
codegen_flags: <defaults>
</compile_context>

<pallas_src>
import functools

import jax
import jax.numpy as jnp
import numpy as np
from jax.experimental import pallas as pl
from jax.experimental.pallas import tpu as pltpu


def _round_up(x, m):
    return (x + m - 1) // m * m


# PyTorch gate order [i, f, g, o] -> kernel order [i, f, o, g] (sigmoid gates contiguous).
_GATE_PERM = np.array([0, 1, 3, 2])


def _prep_gate_cols(w, H, Hp):
    """w: (4H, K) torch-layout gate weight -> (K, 4Hp), per-gate zero-padded to Hp lanes,
    gate order [i, f, o, g]."""
    K = w.shape[1]
    w4 = w.reshape(4, H, K)[_GATE_PERM]                       # (4, H, K)
    w4p = jnp.zeros((4, Hp, K), w.dtype).at[:, :H, :].set(w4)  # pad each gate to Hp
    return jnp.transpose(w4p.reshape(4 * Hp, K), (1, 0))       # (K, 4Hp)


def _prep_gate_bias(b, H, Hp):
    b4 = b.reshape(4, H)[_GATE_PERM]
    b4p = jnp.zeros((4, Hp), b.dtype).at[:, :H].set(b4)
    return b4p.reshape(1, 4 * Hp)


def prepare_params(layers, fc, hidden_size):
    """layers: [(w_ih (4H,in), w_hh (4H,H), b_ih (4H,), b_hh (4H,)), ...]  (PyTorch layout)
       fc: (w_fc (O,H), b_fc (O,))
       Returns kernel-ready padded / reordered / bf16 parameters."""
    H = hidden_size
    Hp = _round_up(H, 128)
    G = 4 * Hp

    w_ih0, w_hh0, b_ih0, b_hh0 = layers[0]
    params = {}
    # Layer-0 input projection weights (used by the wrapper's big GEMM, kernel never sees them).
    params["w_in0"] = _prep_gate_cols(w_ih0, H, Hp).astype(jnp.bfloat16)        # (in, 4Hp)
    params["b0"] = _prep_gate_bias(b_ih0 + b_hh0, H, Hp).astype(jnp.float32)    # (1, 4Hp)
    # Layer-0 recurrent weight, padded along the h dimension.
    whh0 = _prep_gate_cols(w_hh0, H, Hp)                                        # (H, 4Hp)
    params["w_hh0"] = (jnp.zeros((Hp, G), jnp.float32).at[:H, :].set(whh0)
                       ).astype(jnp.bfloat16)                                   # (Hp, 4Hp)

    w_cat, biases = [], []
    for (w_ih, w_hh, b_ih, b_hh) in layers[1:]:
        wih = _prep_gate_cols(w_ih, H, Hp)   # (H, 4Hp)  input of layer l>=1 is h_{l-1}
        whh = _prep_gate_cols(w_hh, H, Hp)   # (H, 4Hp)
        wc = jnp.zeros((2 * Hp, G), jnp.float32)
        wc = wc.at[:H, :].set(wih)
        wc = wc.at[Hp:Hp + H, :].set(whh)
        w_cat.append(wc.astype(jnp.bfloat16))                                   # (2Hp, 4Hp)
        biases.append(_prep_gate_bias(b_ih + b_hh, H, Hp).astype(jnp.float32))  # (1, 4Hp)
    params["w_cat"] = tuple(w_cat)
    params["bias"] = tuple(biases)

    w_fc, b_fc = fc
    O = w_fc.shape[0]
    Op = _round_up(O, 128)
    wfc = jnp.zeros((Hp, Op), jnp.float32).at[:H, :O].set(jnp.transpose(w_fc))
    params["w_fc"] = wfc.astype(jnp.bfloat16)                                   # (Hp, Op)
    params["b_fc"] = jnp.zeros((1, Op), jnp.float32).at[0, :O].set(b_fc)        # (1, Op)
    return params


def _make_kernel(num_layers, seq_len, tc, Bp, Hp, Op):
    G = 4 * Hp
    L = num_layers
    mask_tail = (seq_len % tc) != 0

    def _cell(gates, c_prev):
        # gates: (Bp, 4Hp) f32, gate order [i, f, o, g].
        # sigmoid(x) == 0.5*(tanh(0.5*x)+1): single EUP op, applied to all 3 sigmoid gates at once.
        ifo = 0.5 * (jnp.tanh(0.5 * gates[:, :3 * Hp]) + 1.0)
        g = jnp.tanh(gates[:, 3 * Hp:])
        i_g = ifo[:, 0 * Hp:1 * Hp]
        f_g = ifo[:, 1 * Hp:2 * Hp]
        o_g = ifo[:, 2 * Hp:3 * Hp]
        c_new = f_g * c_prev + i_g * g
        h_new = o_g * jnp.tanh(c_new)
        return h_new, c_new

    def kernel(*refs):
        xp_ref = refs[0]                        # (tc, Bp, 4Hp) f32: precomputed x@W_ih0 + b0
        whh0_ref = refs[1]                      # (Hp, 4Hp) bf16
        lrefs = refs[2:2 + 2 * (L - 1)]         # (w_cat_l, bias_l) for l = 1..L-1
        wfc_ref = refs[2 + 2 * (L - 1)]         # (Hp, Op) bf16
        bfc_ref = refs[3 + 2 * (L - 1)]         # (1, Op) f32
        out_ref = refs[4 + 2 * (L - 1)]         # (Bp, Op) f32
        h_sc = refs[5 + 2 * (L - 1)]            # (L, Bp, Hp) f32, persists across chunks
        c_sc = refs[6 + 2 * (L - 1)]            # (L, Bp, Hp) f32

        chunk_id = pl.program_id(0)

        @pl.when(chunk_id == 0)
        def _():
            h_sc[...] = jnp.zeros_like(h_sc)
            c_sc[...] = jnp.zeros_like(c_sc)

        # Loop-invariant weight loads and bias broadcasts hoisted out of the timestep loop.
        w_hh0 = whh0_ref[...]
        w_cat = [lrefs[2 * i][...] for i in range(L - 1)]
        bias = [jnp.broadcast_to(lrefs[2 * i + 1][...], (Bp, G)) for i in range(L - 1)]

        def timestep(s):
            # Layer 0: only the recurrent matmul is on the critical path; the input
            # projection for this timestep was precomputed outside the loop.
            gates = xp_ref[s] + jnp.dot(h_sc[0].astype(jnp.bfloat16), w_hh0,
                                        preferred_element_type=jnp.float32)
            h_new, c_new = _cell(gates, c_sc[0])
            h_sc[0] = h_new
            c_sc[0] = c_new
            h_lower = h_new
            # Layers >= 1: single fused [h_{l-1}, h_l] @ [W_ih; W_hh] matmul per step.
            for l in range(1, L):
                zcat = jnp.concatenate([h_lower, h_sc[l]], axis=-1).astype(jnp.bfloat16)
                gates = jnp.dot(zcat, w_cat[l - 1],
                                preferred_element_type=jnp.float32) + bias[l - 1]
                h_new, c_new = _cell(gates, c_sc[l])
                h_sc[l] = h_new
                c_sc[l] = c_new
                h_lower = h_new

        # Statically unrolled chunk of timesteps (chunk kept small -> full scheduler visibility).
        for s in range(tc):
            if mask_tail:
                pl.when(chunk_id * tc + s < seq_len)(functools.partial(timestep, s))
            else:
                timestep(s)

        # Final Linear on the last timestep's top-layer hidden state (lane-dense padded output).
        @pl.when(chunk_id == pl.num_programs(0) - 1)
        def _():
            out_ref[...] = (jnp.dot(h_sc[L - 1].astype(jnp.bfloat16), wfc_ref[...],
                                    preferred_element_type=jnp.float32)
                            + bfc_ref[...])

    return kernel


@functools.partial(jax.jit, static_argnames=("out_features", "seq_chunk"))
def lstm_forward(x, params, *, out_features, seq_chunk=4):
    """x: (B, T, input_size), batch_first like the PyTorch module. Returns (B, out_features)."""
    B, T, _ = x.shape
    w_in0, b0 = params["w_in0"], params["b0"]
    w_hh0 = params["w_hh0"]
    w_cat, bias = params["w_cat"], params["bias"]
    w_fc, b_fc = params["w_fc"], params["b_fc"]

    L = 1 + len(w_cat)
    Hp, G = w_hh0.shape
    Op = w_fc.shape[1]
    Bp = _round_up(max(B, 1), 8)
    Tc = max(1, min(seq_chunk, T))
    n_chunks = (T + Tc - 1) // Tc
    Tp = n_chunks * Tc

    # Layer-0 input projection (+ bias) for ALL timesteps as one big GEMM, outside the recurrence.
    xproj = jnp.einsum("bti,ig->btg", x.astype(jnp.bfloat16), w_in0,
                       preferred_element_type=jnp.float32) + b0        # (B, T, 4Hp) f32
    xproj = jnp.pad(xproj, ((0, Bp - B), (0, Tp - T), (0, 0)))          # pad batch / time
    xproj = jnp.transpose(xproj, (1, 0, 2))                             # time-major (Tp, Bp, 4Hp)

    kernel = _make_kernel(L, T, Tc, Bp, Hp, Op)

    in_specs = [pl.BlockSpec((Tc, Bp, G), lambda c: (c, 0, 0)),         # pipelined over T chunks
                pl.BlockSpec((Hp, G), lambda c: (0, 0))]                # resident weights
    args = [xproj, w_hh0]
    for l in range(L - 1):
        in_specs += [pl.BlockSpec((2 * Hp, G), lambda c: (0, 0)),
                     pl.BlockSpec((1, G), lambda c: (0, 0))]
        args += [w_cat[l], bias[l]]
    in_specs += [pl.BlockSpec((Hp, Op), lambda c: (0, 0)),
                 pl.BlockSpec((1, Op), lambda c: (0, 0))]
    args += [w_fc, b_fc]

    # VMEM budget: double-buffered xproj chunk + resident bf16 weights + state + headroom.
    weight_bytes = (w_hh0.size + sum(w.size for w in w_cat) + w_fc.size) * 2
    bias_bytes = (sum(b.size for b in bias) + b0.size + b_fc.size) * 4
    vmem_bytes = (2 * Tc * Bp * G * 4 + 2 * (weight_bytes + bias_bytes)
                  + 2 * Bp * Op * 4 + 2 * L * Bp * Hp * 4 + (4 << 20))
    vmem_bytes = int(min(max(vmem_bytes, 32 << 20), 64 << 20))

    flops = 2 * T * Bp * (Hp * G + (L - 1) * 2 * Hp * G) + 2 * Bp * Hp * Op
    transc = T * L * Bp * 5 * Hp
    bytes_accessed = int(xproj.size * 4 + weight_bytes + bias_bytes + Bp * Op * 4)

    out = pl.pallas_call(
        kernel,
        out_shape=jax.ShapeDtypeStruct((Bp, Op), jnp.float32),
        grid=(n_chunks,),
        in_specs=in_specs,
        out_specs=pl.BlockSpec((Bp, Op), lambda c: (0, 0)),
        scratch_shapes=[
            pltpu.VMEM((L, Bp, Hp), jnp.float32),   # h state, persists across grid steps
            pltpu.VMEM((L, Bp, Hp), jnp.float32),   # c state
        ],
        compiler_params=pltpu.CompilerParams(
            dimension_semantics=("arbitrary",),      # sequential recurrence over time chunks
            vmem_limit_bytes=vmem_bytes),
        cost_estimate=pl.CostEstimate(flops=int(flops), transcendentals=int(transc),
                                      bytes_accessed=bytes_accessed),
    )(*args)
    return out[:B, :out_features]


def init_params(key, input_size, hidden_size, num_layers, output_size):
    """PyTorch-style uniform(-1/sqrt(H), 1/sqrt(H)) init, PyTorch weight layout."""
    H = hidden_size
    bound = 1.0 / np.sqrt(H)
    layers = []
    for l in range(num_layers):
        in_l = input_size if l == 0 else hidden_size
        key, k1, k2, k3, k4 = jax.random.split(key, 5)
        layers.append((
            jax.random.uniform(k1, (4 * H, in_l), jnp.float32, -bound, bound),
            jax.random.uniform(k2, (4 * H, H), jnp.float32, -bound, bound),
            jax.random.uniform(k3, (4 * H,), jnp.float32, -bound, bound),
            jax.random.uniform(k4, (4 * H,), jnp.float32, -bound, bound),
        ))
    key, k5, k6 = jax.random.split(key, 3)
    fc = (jax.random.uniform(k5, (output_size, H), jnp.float32, -bound, bound),
          jax.random.uniform(k6, (output_size,), jnp.float32, -bound, bound))
    return layers, fc


def lstm_reference(x, layers, fc):
    """Pure-JAX f32 reference of the same forward pass (PyTorch semantics)."""
    H = layers[0][1].shape[1]
    B, T, _ = x.shape
    L = len(layers)
    h = [jnp.zeros((B, H), jnp.float32) for _ in range(L)]
    c = [jnp.zeros((B, H), jnp.float32) for _ in range(L)]
    for t in range(T):
        inp = x[:, t, :]
        for l, (w_ih, w_hh, b_ih, b_hh) in enumerate(layers):
            gates = inp @ w_ih.T + h[l] @ w_hh.T + b_ih + b_hh
            i_g = jax.nn.sigmoid(gates[:, 0 * H:1 * H])
            f_g = jax.nn.sigmoid(gates[:, 1 * H:2 * H])
            g_g = jnp.tanh(gates[:, 2 * H:3 * H])
            o_g = jax.nn.sigmoid(gates[:, 3 * H:4 * H])
            c[l] = f_g * c[l] + i_g * g_g
            h[l] = o_g * jnp.tanh(c[l])
            inp = h[l]
    w_fc, b_fc = fc
    return h[-1] @ w_fc.T + b_fc


if __name__ == "__main__":
    batch = 2
    seq = 8
    input_size = 4
    hidden_size = 32
    num_layers = 2
    output_size = 4

    key = jax.random.PRNGKey(0)
    key, kx = jax.random.split(key)
    x = jax.random.normal(kx, (batch, seq, input_size), jnp.float32)

    layers, fc = init_params(key, input_size, hidden_size, num_layers, output_size)
    params = prepare_params(layers, fc, hidden_size)

    out = lstm_forward(x, params, out_features=output_size, seq_chunk=4)
    out = jax.block_until_ready(out)

    ref = lstm_reference(x, layers, fc)
    # bf16 weights / matmul inputs -> small numerical deviation vs the f32 reference.
    np.testing.assert_allclose(np.asarray(out), np.asarray(ref), rtol=3e-2, atol=3e-2)

    print("KERNEL_OK")
</pallas_src>

<mosaic_0001>
module attributes {stable_mosaic.version = 11 : i64} {
  func.func @kernel(%arg0: i32, %arg1: memref<4x8x512xf32, #tpu.memory_space<vmem>>, %arg2: memref<128x512xbf16, #tpu.memory_space<vmem>>, %arg3: memref<256x512xbf16, #tpu.memory_space<vmem>>, %arg4: memref<1x512xf32, #tpu.memory_space<vmem>>, %arg5: memref<128x128xbf16, #tpu.memory_space<vmem>>, %arg6: memref<1x128xf32, #tpu.memory_space<vmem>>, %arg7: memref<8x128xf32, #tpu.memory_space<vmem>>, %arg8: memref<2x8x128xf32, #tpu.memory_space<vmem>>, %arg9: memref<2x8x128xf32, #tpu.memory_space<vmem>>) attributes {dimension_semantics = [#tpu.dimension_semantics<arbitrary>], iteration_bounds = array<i64: 2>, scalar_prefetch = 0 : i64, scratch_operands = 2 : i64, tpu.core_type = #tpu.core_type<tc>, window_params = [{transform_indices = @transform_0, window_bounds = array<i64: 4, 8, 512>}, {pipeline_mode = #tpu.pipeline_mode<synchronous>, transform_indices = @transform_1, window_bounds = array<i64: 128, 512>}, {pipeline_mode = #tpu.pipeline_mode<synchronous>, transform_indices = @transform_2, window_bounds = array<i64: 256, 512>}, {pipeline_mode = #tpu.pipeline_mode<synchronous>, transform_indices = @transform_3, window_bounds = array<i64: 1, 512>}, {pipeline_mode = #tpu.pipeline_mode<synchronous>, transform_indices = @transform_4, window_bounds = array<i64: 128, 128>}, {pipeline_mode = #tpu.pipeline_mode<synchronous>, transform_indices = @transform_5, window_bounds = array<i64: 1, 128>}, {pipeline_mode = #tpu.pipeline_mode<synchronous>, transform_indices = @transform_6, window_bounds = array<i64: 8, 128>}]} {
    %c0_i32 = arith.constant 0 : i32
    %0 = arith.cmpi eq, %arg0, %c0_i32 : i32
    %1 = arith.extui %0 : i1 to i32
    %c0_i32_0 = arith.constant 0 : i32
    %2 = arith.cmpi ne, %1, %c0_i32_0 : i32
    scf.if %2 {
      %cst_143 = arith.constant 0.000000e+00 : f32
      %271 = vector.broadcast %cst_143 : f32 to vector<2x8x128xf32>
      %c0_144 = arith.constant 0 : index
      %c0_145 = arith.constant 0 : index
      %c0_146 = arith.constant 0 : index
      %272 = vector.load %arg8[%c0_144, %c0_145, %c0_146] : memref<2x8x128xf32, #tpu.memory_space<vmem>>, vector<2x8x128xf32>
      tpu.vector_store %arg8[%c0_144, %c0_145, %c0_146], %271 {strides = array<i32>} : memref<2x8x128xf32, #tpu.memory_space<vmem>>, vector<2x8x128xf32>,
      %cst_147 = arith.constant 0.000000e+00 : f32
      %273 = vector.broadcast %cst_147 : f32 to vector<2x8x128xf32>
      %c0_148 = arith.constant 0 : index
      %c0_149 = arith.constant 0 : index
      %c0_150 = arith.constant 0 : index
      %274 = vector.load %arg9[%c0_148, %c0_149, %c0_150] : memref<2x8x128xf32, #tpu.memory_space<vmem>>, vector<2x8x128xf32>
      tpu.vector_store %arg9[%c0_148, %c0_149, %c0_150], %273 {strides = array<i32>} : memref<2x8x128xf32, #tpu.memory_space<vmem>>, vector<2x8x128xf32>,
    } else {
    }
    %c0 = arith.constant 0 : index
    %c0_1 = arith.constant 0 : index
    %3 = vector.load %arg2[%c0, %c0_1] : memref<128x512xbf16, #tpu.memory_space<vmem>>, vector<128x512xbf16>
    %c0_2 = arith.constant 0 : index
    %c0_3 = arith.constant 0 : index
    %4 = vector.load %arg3[%c0_2, %c0_3] : memref<256x512xbf16, #tpu.memory_space<vmem>>, vector<256x512xbf16>
    %c0_4 = arith.constant 0 : index
    %c0_5 = arith.constant 0 : index
    %5 = vector.load %arg4[%c0_4, %c0_5] : memref<1x512xf32, #tpu.memory_space<vmem>>, vector<1x512xf32>
    %6 = vector.shape_cast %5 : vector<1x512xf32> to vector<1x512xf32>
    %7 = vector.broadcast %6 : vector<1x512xf32> to vector<8x512xf32>
    %c0_6 = arith.constant 0 : index
    %c0_7 = arith.constant 0 : index
    %c0_8 = arith.constant 0 : index
    %8 = vector.load %arg1[%c0_6, %c0_7, %c0_8] : memref<4x8x512xf32, #tpu.memory_space<vmem>>, vector<1x8x512xf32>
    %9 = vector.shape_cast %8 : vector<1x8x512xf32> to vector<8x512xf32>
    %c0_9 = arith.constant 0 : index
    %c0_10 = arith.constant 0 : index
    %c0_11 = arith.constant 0 : index
    %10 = vector.load %arg8[%c0_9, %c0_10, %c0_11] : memref<2x8x128xf32, #tpu.memory_space<vmem>>, vector<1x8x128xf32>
    %11 = vector.shape_cast %10 : vector<1x8x128xf32> to vector<8x128xf32>
    %12 = arith.truncf %11 : vector<8x128xf32> to vector<8x128xbf16>
    %cst = arith.constant dense<0.000000e+00> : vector<8x512xf32>
    %13 = tpu.matmul %12, %3, %cst {dimension_numbers = #tpu.dot_dimension_numbers<[1], [0], [0], [1], [0, 0, 1, 1], [], []>} : vector<8x128xbf16>, vector<128x512xbf16>, vector<8x512xf32> -> vector<8x512xf32>
    %14 = arith.addf %9, %13 : vector<8x512xf32>
    %c0_12 = arith.constant 0 : index
    %c0_13 = arith.constant 0 : index
    %c0_14 = arith.constant 0 : index
    %15 = vector.load %arg9[%c0_12, %c0_13, %c0_14] : memref<2x8x128xf32, #tpu.memory_space<vmem>>, vector<1x8x128xf32>
    %16 = vector.shape_cast %15 : vector<1x8x128xf32> to vector<8x128xf32>
    %17 = vector.extract_strided_slice %14 {offsets = [0, 0], sizes = [8, 384], strides = [1, 1]} : vector<8x512xf32> to vector<8x384xf32>
    %cst_15 = arith.constant 5.000000e-01 : f32
    %18 = vector.broadcast %cst_15 : f32 to vector<8x384xf32>
    %19 = arith.mulf %18, %17 : vector<8x384xf32>
    %20 = math.tanh %19 : vector<8x384xf32>
    %cst_16 = arith.constant 1.000000e+00 : f32
    %21 = vector.broadcast %cst_16 : f32 to vector<8x384xf32>
    %22 = arith.addf %20, %21 : vector<8x384xf32>
    %cst_17 = arith.constant 5.000000e-01 : f32
    %23 = vector.broadcast %cst_17 : f32 to vector<8x384xf32>
    %24 = arith.mulf %23, %22 : vector<8x384xf32>
    %25 = vector.extract_strided_slice %14 {offsets = [0, 384], sizes = [8, 128], strides = [1, 1]} : vector<8x512xf32> to vector<8x128xf32>
    %26 = math.tanh %25 : vector<8x128xf32>
    %27 = vector.extract_strided_slice %24 {offsets = [0, 0], sizes = [8, 128], strides = [1, 1]} : vector<8x384xf32> to vector<8x128xf32>
    %28 = vector.extract_strided_slice %24 {offsets = [0, 128], sizes = [8, 128], strides = [1, 1]} : vector<8x384xf32> to vector<8x128xf32>
    %29 = vector.extract_strided_slice %24 {offsets = [0, 256], sizes = [8, 128], strides = [1, 1]} : vector<8x384xf32> to vector<8x128xf32>
    %30 = arith.mulf %28, %16 : vector<8x128xf32>
    %31 = arith.mulf %27, %26 : vector<8x128xf32>
    %32 = arith.addf %30, %31 : vector<8x128xf32>
    %33 = math.tanh %32 : vector<8x128xf32>
    %34 = arith.mulf %29, %33 : vector<8x128xf32>
    %c0_18 = arith.constant 0 : index
    %c0_19 = arith.constant 0 : index
    %c0_20 = arith.constant 0 : index
    %35 = vector.load %arg8[%c0_18, %c0_19, %c0_20] : memref<2x8x128xf32, #tpu.memory_space<vmem>>, vector<1x8x128xf32>
    %36 = vector.shape_cast %35 : vector<1x8x128xf32> to vector<8x128xf32>
    %37 = vector.shape_cast %34 : vector<8x128xf32> to vector<1x8x128xf32>
    tpu.vector_store %arg8[%c0_18, %c0_19, %c0_20], %37 {strides = array<i32>} : memref<2x8x128xf32, #tpu.memory_space<vmem>>, vector<1x8x128xf32>,
    %c0_21 = arith.constant 0 : index
    %c0_22 = arith.constant 0 : index
    %c0_23 = arith.constant 0 : index
    %38 = vector.load %arg9[%c0_21, %c0_22, %c0_23] : memref<2x8x128xf32, #tpu.memory_space<vmem>>, vector<1x8x128xf32>
    %39 = vector.shape_cast %38 : vector<1x8x128xf32> to vector<8x128xf32>
    %40 = vector.shape_cast %32 : vector<8x128xf32> to vector<1x8x128xf32>
    tpu.vector_store %arg9[%c0_21, %c0_22, %c0_23], %40 {strides = array<i32>} : memref<2x8x128xf32, #tpu.memory_space<vmem>>, vector<1x8x128xf32>,
    %c1 = arith.constant 1 : index
    %c0_24 = arith.constant 0 : index
    %c0_25 = arith.constant 0 : index
    %41 = vector.load %arg8[%c1, %c0_24, %c0_25] : memref<2x8x128xf32, #tpu.memory_space<vmem>>, vector<1x8x128xf32>
    %42 = vector.shape_cast %41 : vector<1x8x128xf32> to vector<8x128xf32>
    %43 = tpu.concatenate %34, %42 in 1 : vector<8x128xf32>, vector<8x128xf32> -> vector<8x256xf32>
    %44 = arith.truncf %43 : vector<8x256xf32> to vector<8x256xbf16>
    %cst_26 = arith.constant dense<0.000000e+00> : vector<8x512xf32>
    %45 = tpu.matmul %44, %4, %cst_26 {dimension_numbers = #tpu.dot_dimension_numbers<[1], [0], [0], [1], [0, 0, 1, 1], [], []>} : vector<8x256xbf16>, vector<256x512xbf16>, vector<8x512xf32> -> vector<8x512xf32>
    %46 = arith.addf %45, %7 : vector<8x512xf32>
    %c1_27 = arith.constant 1 : index
    %c0_28 = arith.constant 0 : index
    %c0_29 = arith.constant 0 : index
    %47 = vector.load %arg9[%c1_27, %c0_28, %c0_29] : memref<2x8x128xf32, #tpu.memory_space<vmem>>, vector<1x8x128xf32>
    %48 = vector.shape_cast %47 : vector<1x8x128xf32> to vector<8x128xf32>
    %49 = vector.extract_strided_slice %46 {offsets = [0, 0], sizes = [8, 384], strides = [1, 1]} : vector<8x512xf32> to vector<8x384xf32>
    %cst_30 = arith.constant 5.000000e-01 : f32
    %50 = vector.broadcast %cst_30 : f32 to vector<8x384xf32>
    %51 = arith.mulf %50, %49 : vector<8x384xf32>
    %52 = math.tanh %51 : vector<8x384xf32>
    %cst_31 = arith.constant 1.000000e+00 : f32
    %53 = vector.broadcast %cst_31 : f32 to vector<8x384xf32>
    %54 = arith.addf %52, %53 : vector<8x384xf32>
    %cst_32 = arith.constant 5.000000e-01 : f32
    %55 = vector.broadcast %cst_32 : f32 to vector<8x384xf32>
    %56 = arith.mulf %55, %54 : vector<8x384xf32>
    %57 = vector.extract_strided_slice %46 {offsets = [0, 384], sizes = [8, 128], strides = [1, 1]} : vector<8x512xf32> to vector<8x128xf32>
    %58 = math.tanh %57 : vector<8x128xf32>
    %59 = vector.extract_strided_slice %56 {offsets = [0, 0], sizes = [8, 128], strides = [1, 1]} : vector<8x384xf32> to vector<8x128xf32>
    %60 = vector.extract_strided_slice %56 {offsets = [0, 128], sizes = [8, 128], strides = [1, 1]} : vector<8x384xf32> to vector<8x128xf32>
    %61 = vector.extract_strided_slice %56 {offsets = [0, 256], sizes = [8, 128], strides = [1, 1]} : vector<8x384xf32> to vector<8x128xf32>
    %62 = arith.mulf %60, %48 : vector<8x128xf32>
    %63 = arith.mulf %59, %58 : vector<8x128xf32>
    %64 = arith.addf %62, %63 : vector<8x128xf32>
    %65 = math.tanh %64 : vector<8x128xf32>
    %66 = arith.mulf %61, %65 : vector<8x128xf32>
    %c1_33 = arith.constant 1 : index
    %c0_34 = arith.constant 0 : index
    %c0_35 = arith.constant 0 : index
    %67 = vector.load %arg8[%c1_33, %c0_34, %c0_35] : memref<2x8x128xf32, #tpu.memory_space<vmem>>, vector<1x8x128xf32>
    %68 = vector.shape_cast %67 : vector<1x8x128xf32> to vector<8x128xf32>
    %69 = vector.shape_cast %66 : vector<8x128xf32> to vector<1x8x128xf32>
    tpu.vector_store %arg8[%c1_33, %c0_34, %c0_35], %69 {strides = array<i32>} : memref<2x8x128xf32, #tpu.memory_space<vmem>>, vector<1x8x128xf32>,
    %c1_36 = arith.constant 1 : index
    %c0_37 = arith.constant 0 : index
    %c0_38 = arith.constant 0 : index
    %70 = vector.load %arg9[%c1_36, %c0_37, %c0_38] : memref<2x8x128xf32, #tpu.memory_space<vmem>>, vector<1x8x128xf32>
    %71 = vector.shape_cast %70 : vector<1x8x128xf32> to vector<8x128xf32>
    %72 = vector.shape_cast %64 : vector<8x128xf32> to vector<1x8x128xf32>
    tpu.vector_store %arg9[%c1_36, %c0_37, %c0_38], %72 {strides = array<i32>} : memref<2x8x128xf32, #tpu.memory_space<vmem>>, vector<1x8x128xf32>,
    %c1_39 = arith.constant 1 : index
    %c0_40 = arith.constant 0 : index
    %c0_41 = arith.constant 0 : index
    %73 = vector.load %arg1[%c1_39, %c0_40, %c0_41] : memref<4x8x512xf32, #tpu.memory_space<vmem>>, vector<1x8x512xf32>
    %74 = vector.shape_cast %73 : vector<1x8x512xf32> to vector<8x512xf32>
    %c0_42 = arith.constant 0 : index
    %c0_43 = arith.constant 0 : index
    %c0_44 = arith.constant 0 : index
    %75 = vector.load %arg8[%c0_42, %c0_43, %c0_44] : memref<2x8x128xf32, #tpu.memory_space<vmem>>, vector<1x8x128xf32>
    %76 = vector.shape_cast %75 : vector<1x8x128xf32> to vector<8x128xf32>
    %77 = arith.truncf %76 : vector<8x128xf32> to vector<8x128xbf16>
    %cst_45 = arith.constant dense<0.000000e+00> : vector<8x512xf32>
    %78 = tpu.matmul %77, %3, %cst_45 {dimension_numbers = #tpu.dot_dimension_numbers<[1], [0], [0], [1], [0, 0, 1, 1], [], []>} : vector<8x128xbf16>, vector<128x512xbf16>, vector<8x512xf32> -> vector<8x512xf32>
    %79 = arith.addf %74, %78 : vector<8x512xf32>
    %c0_46 = arith.constant 0 : index
    %c0_47 = arith.constant 0 : index
    %c0_48 = arith.constant 0 : index
    %80 = vector.load %arg9[%c0_46, %c0_47, %c0_48] : memref<2x8x128xf32, #tpu.memory_space<vmem>>, vector<1x8x128xf32>
    %81 = vector.shape_cast %80 : vector<1x8x128xf32> to vector<8x128xf32>
    %82 = vector.extract_strided_slice %79 {offsets = [0, 0], sizes = [8, 384], strides = [1, 1]} : vector<8x512xf32> to vector<8x384xf32>
    %cst_49 = arith.constant 5.000000e-01 : f32
    %83 = vector.broadcast %cst_49 : f32 to vector<8x384xf32>
    %84 = arith.mulf %83, %82 : vector<8x384xf32>
    %85 = math.tanh %84 : vector<8x384xf32>
    %cst_50 = arith.constant 1.000000e+00 : f32
    %86 = vector.broadcast %cst_50 : f32 to vector<8x384xf32>
    %87 = arith.addf %85, %86 : vector<8x384xf32>
    %cst_51 = arith.constant 5.000000e-01 : f32
    %88 = vector.broadcast %cst_51 : f32 to vector<8x384xf32>
    %89 = arith.mulf %88, %87 : vector<8x384xf32>
    %90 = vector.extract_strided_slice %79 {offsets = [0, 384], sizes = [8, 128], strides = [1, 1]} : vector<8x512xf32> to vector<8x128xf32>
    %91 = math.tanh %90 : vector<8x128xf32>
    %92 = vector.extract_strided_slice %89 {offsets = [0, 0], sizes = [8, 128], strides = [1, 1]} : vector<8x384xf32> to vector<8x128xf32>
    %93 = vector.extract_strided_slice %89 {offsets = [0, 128], sizes = [8, 128], strides = [1, 1]} : vector<8x384xf32> to vector<8x128xf32>
    %94 = vector.extract_strided_slice %89 {offsets = [0, 256], sizes = [8, 128], strides = [1, 1]} : vector<8x384xf32> to vector<8x128xf32>
    %95 = arith.mulf %93, %81 : vector<8x128xf32>
    %96 = arith.mulf %92, %91 : vector<8x128xf32>
    %97 = arith.addf %95, %96 : vector<8x128xf32>
    %98 = math.tanh %97 : vector<8x128xf32>
    %99 = arith.mulf %94, %98 : vector<8x128xf32>
    %c0_52 = arith.constant 0 : index
    %c0_53 = arith.constant 0 : index
    %c0_54 = arith.constant 0 : index
    %100 = vector.load %arg8[%c0_52, %c0_53, %c0_54] : memref<2x8x128xf32, #tpu.memory_space<vmem>>, vector<1x8x128xf32>
    %101 = vector.shape_cast %100 : vector<1x8x128xf32> to vector<8x128xf32>
    %102 = vector.shape_cast %99 : vector<8x128xf32> to vector<1x8x128xf32>
    tpu.vector_store %arg8[%c0_52, %c0_53, %c0_54], %102 {strides = array<i32>} : memref<2x8x128xf32, #tpu.memory_space<vmem>>, vector<1x8x128xf32>,
    %c0_55 = arith.constant 0 : index
    %c0_56 = arith.constant 0 : index
    %c0_57 = arith.constant 0 : index
    %103 = vector.load %arg9[%c0_55, %c0_56, %c0_57] : memref<2x8x128xf32, #tpu.memory_space<vmem>>, vector<1x8x128xf32>
    %104 = vector.shape_cast %103 : vector<1x8x128xf32> to vector<8x128xf32>
    %105 = vector.shape_cast %97 : vector<8x128xf32> to vector<1x8x128xf32>
    tpu.vector_store %arg9[%c0_55, %c0_56, %c0_57], %105 {strides = array<i32>} : memref<2x8x128xf32, #tpu.memory_space<vmem>>, vector<1x8x128xf32>,
    %c1_58 = arith.constant 1 : index
    %c0_59 = arith.constant 0 : index
    %c0_60 = arith.constant 0 : index
    %106 = vector.load %arg8[%c1_58, %c0_59, %c0_60] : memref<2x8x128xf32, #tpu.memory_space<vmem>>, vector<1x8x128xf32>
    %107 = vector.shape_cast %106 : vector<1x8x128xf32> to vector<8x128xf32>
    %108 = tpu.concatenate %99, %107 in 1 : vector<8x128xf32>, vector<8x128xf32> -> vector<8x256xf32>
    %109 = arith.truncf %108 : vector<8x256xf32> to vector<8x256xbf16>
    %cst_61 = arith.constant dense<0.000000e+00> : vector<8x512xf32>
    %110 = tpu.matmul %109, %4, %cst_61 {dimension_numbers = #tpu.dot_dimension_numbers<[1], [0], [0], [1], [0, 0, 1, 1], [], []>} : vector<8x256xbf16>, vector<256x512xbf16>, vector<8x512xf32> -> vector<8x512xf32>
    %111 = arith.addf %110, %7 : vector<8x512xf32>
    %c1_62 = arith.constant 1 : index
    %c0_63 = arith.constant 0 : index
    %c0_64 = arith.constant 0 : index
    %112 = vector.load %arg9[%c1_62, %c0_63, %c0_64] : memref<2x8x128xf32, #tpu.memory_space<vmem>>, vector<1x8x128xf32>
    %113 = vector.shape_cast %112 : vector<1x8x128xf32> to vector<8x128xf32>
    %114 = vector.extract_strided_slice %111 {offsets = [0, 0], sizes = [8, 384], strides = [1, 1]} : vector<8x512xf32> to vector<8x384xf32>
    %cst_65 = arith.constant 5.000000e-01 : f32
    %115 = vector.broadcast %cst_65 : f32 to vector<8x384xf32>
    %116 = arith.mulf %115, %114 : vector<8x384xf32>
    %117 = math.tanh %116 : vector<8x384xf32>
    %cst_66 = arith.constant 1.000000e+00 : f32
    %118 = vector.broadcast %cst_66 : f32 to vector<8x384xf32>
    %119 = arith.addf %117, %118 : vector<8x384xf32>
    %cst_67 = arith.constant 5.000000e-01 : f32
    %120 = vector.broadcast %cst_67 : f32 to vector<8x384xf32>
    %121 = arith.mulf %120, %119 : vector<8x384xf32>
    %122 = vector.extract_strided_slice %111 {offsets = [0, 384], sizes = [8, 128], strides = [1, 1]} : vector<8x512xf32> to vector<8x128xf32>
    %123 = math.tanh %122 : vector<8x128xf32>
    %124 = vector.extract_strided_slice %121 {offsets = [0, 0], sizes = [8, 128], strides = [1, 1]} : vector<8x384xf32> to vector<8x128xf32>
    %125 = vector.extract_strided_slice %121 {offsets = [0, 128], sizes = [8, 128], strides = [1, 1]} : vector<8x384xf32> to vector<8x128xf32>
    %126 = vector.extract_strided_slice %121 {offsets = [0, 256], sizes = [8, 128], strides = [1, 1]} : vector<8x384xf32> to vector<8x128xf32>
    %127 = arith.mulf %125, %113 : vector<8x128xf32>
    %128 = arith.mulf %124, %123 : vector<8x128xf32>
    %129 = arith.addf %127, %128 : vector<8x128xf32>
    %130 = math.tanh %129 : vector<8x128xf32>
    %131 = arith.mulf %126, %130 : vector<8x128xf32>
    %c1_68 = arith.constant 1 : index
    %c0_69 = arith.constant 0 : index
    %c0_70 = arith.constant 0 : index
    %132 = vector.load %arg8[%c1_68, %c0_69, %c0_70] : memref<2x8x128xf32, #tpu.memory_space<vmem>>, vector<1x8x128xf32>
    %133 = vector.shape_cast %132 : vector<1x8x128xf32> to vector<8x128xf32>
    %134 = vector.shape_cast %131 : vector<8x128xf32> to vector<1x8x128xf32>
    tpu.vector_store %arg8[%c1_68, %c0_69, %c0_70], %134 {strides = array<i32>} : memref<2x8x128xf32, #tpu.memory_space<vmem>>, vector<1x8x128xf32>,
    %c1_71 = arith.constant 1 : index
    %c0_72 = arith.constant 0 : index
    %c0_73 = arith.constant 0 : index
    %135 = vector.load %arg9[%c1_71, %c0_72, %c0_73] : memref<2x8x128xf32, #tpu.memory_space<vmem>>, vector<1x8x128xf32>
    %136 = vector.shape_cast %135 : vector<1x8x128xf32> to vector<8x128xf32>
    %137 = vector.shape_cast %129 : vector<8x128xf32> to vector<1x8x128xf32>
    tpu.vector_store %arg9[%c1_71, %c0_72, %c0_73], %137 {strides = array<i32>} : memref<2x8x128xf32, #tpu.memory_space<vmem>>, vector<1x8x128xf32>,
    %c2 = arith.constant 2 : index
    %c0_74 = arith.constant 0 : index
    %c0_75 = arith.constant 0 : index
    %138 = vector.load %arg1[%c2, %c0_74, %c0_75] : memref<4x8x512xf32, #tpu.memory_space<vmem>>, vector<1x8x512xf32>
    %139 = vector.shape_cast %138 : vector<1x8x512xf32> to vector<8x512xf32>
    %c0_76 = arith.constant 0 : index
    %c0_77 = arith.constant 0 : index
    %c0_78 = arith.constant 0 : index
    %140 = vector.load %arg8[%c0_76, %c0_77, %c0_78] : memref<2x8x128xf32, #tpu.memory_space<vmem>>, vector<1x8x128xf32>
    %141 = vector.shape_cast %140 : vector<1x8x128xf32> to vector<8x128xf32>
    %142 = arith.truncf %141 : vector<8x128xf32> to vector<8x128xbf16>
    %cst_79 = arith.constant dense<0.000000e+00> : vector<8x512xf32>
    %143 = tpu.matmul %142, %3, %cst_79 {dimension_numbers = #tpu.dot_dimension_numbers<[1], [0], [0], [1], [0, 0, 1, 1], [], []>} : vector<8x128xbf16>, vector<128x512xbf16>, vector<8x512xf32> -> vector<8x512xf32>
    %144 = arith.addf %139, %143 : vector<8x512xf32>
    %c0_80 = arith.constant 0 : index
    %c0_81 = arith.constant 0 : index
    %c0_82 = arith.constant 0 : index
    %145 = vector.load %arg9[%c0_80, %c0_81, %c0_82] : memref<2x8x128xf32, #tpu.memory_space<vmem>>, vector<1x8x128xf32>
    %146 = vector.shape_cast %145 : vector<1x8x128xf32> to vector<8x128xf32>
    %147 = vector.extract_strided_slice %144 {offsets = [0, 0], sizes = [8, 384], strides = [1, 1]} : vector<8x512xf32> to vector<8x384xf32>
    %cst_83 = arith.constant 5.000000e-01 : f32
    %148 = vector.broadcast %cst_83 : f32 to vector<8x384xf32>
    %149 = arith.mulf %148, %147 : vector<8x384xf32>
    %150 = math.tanh %149 : vector<8x384xf32>
    %cst_84 = arith.constant 1.000000e+00 : f32
    %151 = vector.broadcast %cst_84 : f32 to vector<8x384xf32>
    %152 = arith.addf %150, %151 : vector<8x384xf32>
    %cst_85 = arith.constant 5.000000e-01 : f32
    %153 = vector.broadcast %cst_85 : f32 to vector<8x384xf32>
    %154 = arith.mulf %153, %152 : vector<8x384xf32>
    %155 = vector.extract_strided_slice %144 {offsets = [0, 384], sizes = [8, 128], strides = [1, 1]} : vector<8x512xf32> to vector<8x128xf32>
    %156 = math.tanh %155 : vector<8x128xf32>
    %157 = vector.extract_strided_slice %154 {offsets = [0, 0], sizes = [8, 128], strides = [1, 1]} : vector<8x384xf32> to vector<8x128xf32>
    %158 = vector.extract_strided_slice %154 {offsets = [0, 128], sizes = [8, 128], strides = [1, 1]} : vector<8x384xf32> to vector<8x128xf32>
    %159 = vector.extract_strided_slice %154 {offsets = [0, 256], sizes = [8, 128], strides = [1, 1]} : vector<8x384xf32> to vector<8x128xf32>
    %160 = arith.mulf %158, %146 : vector<8x128xf32>
    %161 = arith.mulf %157, %156 : vector<8x128xf32>
    %162 = arith.addf %160, %161 : vector<8x128xf32>
    %163 = math.tanh %162 : vector<8x128xf32>
    %164 = arith.mulf %159, %163 : vector<8x128xf32>
    %c0_86 = arith.constant 0 : index
    %c0_87 = arith.constant 0 : index
    %c0_88 = arith.constant 0 : index
    %165 = vector.load %arg8[%c0_86, %c0_87, %c0_88] : memref<2x8x128xf32, #tpu.memory_space<vmem>>, vector<1x8x128xf32>
    %166 = vector.shape_cast %165 : vector<1x8x128xf32> to vector<8x128xf32>
    %167 = vector.shape_cast %164 : vector<8x128xf32> to vector<1x8x128xf32>
    tpu.vector_store %arg8[%c0_86, %c0_87, %c0_88], %167 {strides = array<i32>} : memref<2x8x128xf32, #tpu.memory_space<vmem>>, vector<1x8x128xf32>,
    %c0_89 = arith.constant 0 : index
    %c0_90 = arith.constant 0 : index
    %c0_91 = arith.constant 0 : index
    %168 = vector.load %arg9[%c0_89, %c0_90, %c0_91] : memref<2x8x128xf32, #tpu.memory_space<vmem>>, vector<1x8x128xf32>
    %169 = vector.shape_cast %168 : vector<1x8x128xf32> to vector<8x128xf32>
    %170 = vector.shape_cast %162 : vector<8x128xf32> to vector<1x8x128xf32>
    tpu.vector_store %arg9[%c0_89, %c0_90, %c0_91], %170 {strides = array<i32>} : memref<2x8x128xf32, #tpu.memory_space<vmem>>, vector<1x8x128xf32>,
    %c1_92 = arith.constant 1 : index
    %c0_93 = arith.constant 0 : index
    %c0_94 = arith.constant 0 : index
    %171 = vector.load %arg8[%c1_92, %c0_93, %c0_94] : memref<2x8x128xf32, #tpu.memory_space<vmem>>, vector<1x8x128xf32>
    %172 = vector.shape_cast %171 : vector<1x8x128xf32> to vector<8x128xf32>
    %173 = tpu.concatenate %164, %172 in 1 : vector<8x128xf32>, vector<8x128xf32> -> vector<8x256xf32>
    %174 = arith.truncf %173 : vector<8x256xf32> to vector<8x256xbf16>
    %cst_95 = arith.constant dense<0.000000e+00> : vector<8x512xf32>
    %175 = tpu.matmul %174, %4, %cst_95 {dimension_numbers = #tpu.dot_dimension_numbers<[1], [0], [0], [1], [0, 0, 1, 1], [], []>} : vector<8x256xbf16>, vector<256x512xbf16>, vector<8x512xf32> -> vector<8x512xf32>
    %176 = arith.addf %175, %7 : vector<8x512xf32>
    %c1_96 = arith.constant 1 : index
    %c0_97 = arith.constant 0 : index
    %c0_98 = arith.constant 0 : index
    %177 = vector.load %arg9[%c1_96, %c0_97, %c0_98] : memref<2x8x128xf32, #tpu.memory_space<vmem>>, vector<1x8x128xf32>
    %178 = vector.shape_cast %177 : vector<1x8x128xf32> to vector<8x128xf32>
    %179 = vector.extract_strided_slice %176 {offsets = [0, 0], sizes = [8, 384], strides = [1, 1]} : vector<8x512xf32> to vector<8x384xf32>
    %cst_99 = arith.constant 5.000000e-01 : f32
    %180 = vector.broadcast %cst_99 : f32 to vector<8x384xf32>
    %181 = arith.mulf %180, %179 : vector<8x384xf32>
    %182 = math.tanh %181 : vector<8x384xf32>
    %cst_100 = arith.constant 1.000000e+00 : f32
    %183 = vector.broadcast %cst_100 : f32 to vector<8x384xf32>
    %184 = arith.addf %182, %183 : vector<8x384xf32>
    %cst_101 = arith.constant 5.000000e-01 : f32
    %185 = vector.broadcast %cst_101 : f32 to vector<8x384xf32>
    %186 = arith.mulf %185, %184 : vector<8x384xf32>
    %187 = vector.extract_strided_slice %176 {offsets = [0, 384], sizes = [8, 128], strides = [1, 1]} : vector<8x512xf32> to vector<8x128xf32>
    %188 = math.tanh %187 : vector<8x128xf32>
    %189 = vector.extract_strided_slice %186 {offsets = [0, 0], sizes = [8, 128], strides = [1, 1]} : vector<8x384xf32> to vector<8x128xf32>
    %190 = vector.extract_strided_slice %186 {offsets = [0, 128], sizes = [8, 128], strides = [1, 1]} : vector<8x384xf32> to vector<8x128xf32>
    %191 = vector.extract_strided_slice %186 {offsets = [0, 256], sizes = [8, 128], strides = [1, 1]} : vector<8x384xf32> to vector<8x128xf32>
    %192 = arith.mulf %190, %178 : vector<8x128xf32>
    %193 = arith.mulf %189, %188 : vector<8x128xf32>
    %194 = arith.addf %192, %193 : vector<8x128xf32>
    %195 = math.tanh %194 : vector<8x128xf32>
    %196 = arith.mulf %191, %195 : vector<8x128xf32>
    %c1_102 = arith.constant 1 : index
    %c0_103 = arith.constant 0 : index
    %c0_104 = arith.constant 0 : index
    %197 = vector.load %arg8[%c1_102, %c0_103, %c0_104] : memref<2x8x128xf32, #tpu.memory_space<vmem>>, vector<1x8x128xf32>
    %198 = vector.shape_cast %197 : vector<1x8x128xf32> to vector<8x128xf32>
    %199 = vector.shape_cast %196 : vector<8x128xf32> to vector<1x8x128xf32>
    tpu.vector_store %arg8[%c1_102, %c0_103, %c0_104], %199 {strides = array<i32>} : memref<2x8x128xf32, #tpu.memory_space<vmem>>, vector<1x8x128xf32>,
    %c1_105 = arith.constant 1 : index
    %c0_106 = arith.constant 0 : index
    %c0_107 = arith.constant 0 : index
    %200 = vector.load %arg9[%c1_105, %c0_106, %c0_107] : memref<2x8x128xf32, #tpu.memory_space<vmem>>, vector<1x8x128xf32>
    %201 = vector.shape_cast %200 : vector<1x8x128xf32> to vector<8x128xf32>
    %202 = vector.shape_cast %194 : vector<8x128xf32> to vector<1x8x128xf32>
    tpu.vector_store %arg9[%c1_105, %c0_106, %c0_107], %202 {strides = array<i32>} : memref<2x8x128xf32, #tpu.memory_space<vmem>>, vector<1x8x128xf32>,
    %c3 = arith.constant 3 : index
    %c0_108 = arith.constant 0 : index
    %c0_109 = arith.constant 0 : index
    %203 = vector.load %arg1[%c3, %c0_108, %c0_109] : memref<4x8x512xf32, #tpu.memory_space<vmem>>, vector<1x8x512xf32>
    %204 = vector.shape_cast %203 : vector<1x8x512xf32> to vector<8x512xf32>
    %c0_110 = arith.constant 0 : index
    %c0_111 = arith.constant 0 : index
    %c0_112 = arith.constant 0 : index
    %205 = vector.load %arg8[%c0_110, %c0_111, %c0_112] : memref<2x8x128xf32, #tpu.memory_space<vmem>>, vector<1x8x128xf32>
    %206 = vector.shape_cast %205 : vector<1x8x128xf32> to vector<8x128xf32>
    %207 = arith.truncf %206 : vector<8x128xf32> to vector<8x128xbf16>
    %cst_113 = arith.constant dense<0.000000e+00> : vector<8x512xf32>
    %208 = tpu.matmul %207, %3, %cst_113 {dimension_numbers = #tpu.dot_dimension_numbers<[1], [0], [0], [1], [0, 0, 1, 1], [], []>} : vector<8x128xbf16>, vector<128x512xbf16>, vector<8x512xf32> -> vector<8x512xf32>
    %209 = arith.addf %204, %208 : vector<8x512xf32>
    %c0_114 = arith.constant 0 : index
    %c0_115 = arith.constant 0 : index
    %c0_116 = arith.constant 0 : index
    %210 = vector.load %arg9[%c0_114, %c0_115, %c0_116] : memref<2x8x128xf32, #tpu.memory_space<vmem>>, vector<1x8x128xf32>
    %211 = vector.shape_cast %210 : vector<1x8x128xf32> to vector<8x128xf32>
    %212 = vector.extract_strided_slice %209 {offsets = [0, 0], sizes = [8, 384], strides = [1, 1]} : vector<8x512xf32> to vector<8x384xf32>
    %cst_117 = arith.constant 5.000000e-01 : f32
    %213 = vector.broadcast %cst_117 : f32 to vector<8x384xf32>
    %214 = arith.mulf %213, %212 : vector<8x384xf32>
    %215 = math.tanh %214 : vector<8x384xf32>
    %cst_118 = arith.constant 1.000000e+00 : f32
    %216 = vector.broadcast %cst_118 : f32 to vector<8x384xf32>
    %217 = arith.addf %215, %216 : vector<8x384xf32>
    %cst_119 = arith.constant 5.000000e-01 : f32
    %218 = vector.broadcast %cst_119 : f32 to vector<8x384xf32>
    %219 = arith.mulf %218, %217 : vector<8x384xf32>
    %220 = vector.extract_strided_slice %209 {offsets = [0, 384], sizes = [8, 128], strides = [1, 1]} : vector<8x512xf32> to vector<8x128xf32>
    %221 = math.tanh %220 : vector<8x128xf32>
    %222 = vector.extract_strided_slice %219 {offsets = [0, 0], sizes = [8, 128], strides = [1, 1]} : vector<8x384xf32> to vector<8x128xf32>
    %223 = vector.extract_strided_slice %219 {offsets = [0, 128], sizes = [8, 128], strides = [1, 1]} : vector<8x384xf32> to vector<8x128xf32>
    %224 = vector.extract_strided_slice %219 {offsets = [0, 256], sizes = [8, 128], strides = [1, 1]} : vector<8x384xf32> to vector<8x128xf32>
    %225 = arith.mulf %223, %211 : vector<8x128xf32>
    %226 = arith.mulf %222, %221 : vector<8x128xf32>
    %227 = arith.addf %225, %226 : vector<8x128xf32>
    %228 = math.tanh %227 : vector<8x128xf32>
    %229 = arith.mulf %224, %228 : vector<8x128xf32>
    %c0_120 = arith.constant 0 : index
    %c0_121 = arith.constant 0 : index
    %c0_122 = arith.constant 0 : index
    %230 = vector.load %arg8[%c0_120, %c0_121, %c0_122] : memref<2x8x128xf32, #tpu.memory_space<vmem>>, vector<1x8x128xf32>
    %231 = vector.shape_cast %230 : vector<1x8x128xf32> to vector<8x128xf32>
    %232 = vector.shape_cast %229 : vector<8x128xf32> to vector<1x8x128xf32>
    tpu.vector_store %arg8[%c0_120, %c0_121, %c0_122], %232 {strides = array<i32>} : memref<2x8x128xf32, #tpu.memory_space<vmem>>, vector<1x8x128xf32>,
    %c0_123 = arith.constant 0 : index
    %c0_124 = arith.constant 0 : index
    %c0_125 = arith.constant 0 : index
    %233 = vector.load %arg9[%c0_123, %c0_124, %c0_125] : memref<2x8x128xf32, #tpu.memory_space<vmem>>, vector<1x8x128xf32>
    %234 = vector.shape_cast %233 : vector<1x8x128xf32> to vector<8x128xf32>
    %235 = vector.shape_cast %227 : vector<8x128xf32> to vector<1x8x128xf32>
    tpu.vector_store %arg9[%c0_123, %c0_124, %c0_125], %235 {strides = array<i32>} : memref<2x8x128xf32, #tpu.memory_space<vmem>>, vector<1x8x128xf32>,
    %c1_126 = arith.constant 1 : index
    %c0_127 = arith.constant 0 : index
    %c0_128 = arith.constant 0 : index
    %236 = vector.load %arg8[%c1_126, %c0_127, %c0_128] : memref<2x8x128xf32, #tpu.memory_space<vmem>>, vector<1x8x128xf32>
    %237 = vector.shape_cast %236 : vector<1x8x128xf32> to vector<8x128xf32>
    %238 = tpu.concatenate %229, %237 in 1 : vector<8x128xf32>, vector<8x128xf32> -> vector<8x256xf32>
    %239 = arith.truncf %238 : vector<8x256xf32> to vector<8x256xbf16>
    %cst_129 = arith.constant dense<0.000000e+00> : vector<8x512xf32>
    %240 = tpu.matmul %239, %4, %cst_129 {dimension_numbers = #tpu.dot_dimension_numbers<[1], [0], [0], [1], [0, 0, 1, 1], [], []>} : vector<8x256xbf16>, vector<256x512xbf16>, vector<8x512xf32> -> vector<8x512xf32>
    %241 = arith.addf %240, %7 : vector<8x512xf32>
    %c1_130 = arith.constant 1 : index
    %c0_131 = arith.constant 0 : index
    %c0_132 = arith.constant 0 : index
    %242 = vector.load %arg9[%c1_130, %c0_131, %c0_132] : memref<2x8x128xf32, #tpu.memory_space<vmem>>, vector<1x8x128xf32>
    %243 = vector.shape_cast %242 : vector<1x8x128xf32> to vector<8x128xf32>
    %244 = vector.extract_strided_slice %241 {offsets = [0, 0], sizes = [8, 384], strides = [1, 1]} : vector<8x512xf32> to vector<8x384xf32>
    %cst_133 = arith.constant 5.000000e-01 : f32
    %245 = vector.broadcast %cst_133 : f32 to vector<8x384xf32>
    %246 = arith.mulf %245, %244 : vector<8x384xf32>
    %247 = math.tanh %246 : vector<8x384xf32>
    %cst_134 = arith.constant 1.000000e+00 : f32
    %248 = vector.broadcast %cst_134 : f32 to vector<8x384xf32>
    %249 = arith.addf %247, %248 : vector<8x384xf32>
    %cst_135 = arith.constant 5.000000e-01 : f32
    %250 = vector.broadcast %cst_135 : f32 to vector<8x384xf32>
    %251 = arith.mulf %250, %249 : vector<8x384xf32>
    %252 = vector.extract_strided_slice %241 {offsets = [0, 384], sizes = [8, 128], strides = [1, 1]} : vector<8x512xf32> to vector<8x128xf32>
    %253 = math.tanh %252 : vector<8x128xf32>
    %254 = vector.extract_strided_slice %251 {offsets = [0, 0], sizes = [8, 128], strides = [1, 1]} : vector<8x384xf32> to vector<8x128xf32>
    %255 = vector.extract_strided_slice %251 {offsets = [0, 128], sizes = [8, 128], strides = [1, 1]} : vector<8x384xf32> to vector<8x128xf32>
    %256 = vector.extract_strided_slice %251 {offsets = [0, 256], sizes = [8, 128], strides = [1, 1]} : vector<8x384xf32> to vector<8x128xf32>
    %257 = arith.mulf %255, %243 : vector<8x128xf32>
    %258 = arith.mulf %254, %253 : vector<8x128xf32>
    %259 = arith.addf %257, %258 : vector<8x128xf32>
    %260 = math.tanh %259 : vector<8x128xf32>
    %261 = arith.mulf %256, %260 : vector<8x128xf32>
    %c1_136 = arith.constant 1 : index
    %c0_137 = arith.constant 0 : index
    %c0_138 = arith.constant 0 : index
    %262 = vector.load %arg8[%c1_136, %c0_137, %c0_138] : memref<2x8x128xf32, #tpu.memory_space<vmem>>, vector<1x8x128xf32>
    %263 = vector.shape_cast %262 : vector<1x8x128xf32> to vector<8x128xf32>
    %264 = vector.shape_cast %261 : vector<8x128xf32> to vector<1x8x128xf32>
    tpu.vector_store %arg8[%c1_136, %c0_137, %c0_138], %264 {strides = array<i32>} : memref<2x8x128xf32, #tpu.memory_space<vmem>>, vector<1x8x128xf32>,
    %c1_139 = arith.constant 1 : index
    %c0_140 = arith.constant 0 : index
    %c0_141 = arith.constant 0 : index
    %265 = vector.load %arg9[%c1_139, %c0_140, %c0_141] : memref<2x8x128xf32, #tpu.memory_space<vmem>>, vector<1x8x128xf32>
    %266 = vector.shape_cast %265 : vector<1x8x128xf32> to vector<8x128xf32>
    %267 = vector.shape_cast %259 : vector<8x128xf32> to vector<1x8x128xf32>
    tpu.vector_store %arg9[%c1_139, %c0_140, %c0_141], %267 {strides = array<i32>} : memref<2x8x128xf32, #tpu.memory_space<vmem>>, vector<1x8x128xf32>,
    %c1_i32 = arith.constant 1 : i32
    %268 = arith.cmpi eq, %arg0, %c1_i32 : i32
    %269 = arith.extui %268 : i1 to i32
    %c0_i32_142 = arith.constant 0 : i32
    %270 = arith.cmpi ne, %269, %c0_i32_142 : i32
    scf.if %270 {
      %c1_143 = arith.constant 1 : index
      %c0_144 = arith.constant 0 : index
      %c0_145 = arith.constant 0 : index
      %271 = vector.load %arg8[%c1_143, %c0_144, %c0_145] : memref<2x8x128xf32, #tpu.memory_space<vmem>>, vector<1x8x128xf32>
      %272 = vector.shape_cast %271 : vector<1x8x128xf32> to vector<8x128xf32>
      %273 = arith.truncf %272 : vector<8x128xf32> to vector<8x128xbf16>
      %c0_146 = arith.constant 0 : index
      %c0_147 = arith.constant 0 : index
      %274 = vector.load %arg5[%c0_146, %c0_147] : memref<128x128xbf16, #tpu.memory_space<vmem>>, vector<128x128xbf16>
      %cst_148 = arith.constant dense<0.000000e+00> : vector<8x128xf32>
      %275 = tpu.matmul %273, %274, %cst_148 {dimension_numbers = #tpu.dot_dimension_numbers<[1], [0], [0], [1], [0, 0, 1, 1], [], []>} : vector<8x128xbf16>, vector<128x128xbf16>, vector<8x128xf32> -> vector<8x128xf32>
      %c0_149 = arith.constant 0 : index
      %c0_150 = arith.constant 0 : index
      %276 = vector.load %arg6[%c0_149, %c0_150] : memref<1x128xf32, #tpu.memory_space<vmem>>, vector<1x128xf32>
      %277 = vector.broadcast %276 : vector<1x128xf32> to vector<8x128xf32>
      %278 = arith.addf %275, %277 : vector<8x128xf32>
      %c0_151 = arith.constant 0 : index
      %c0_152 = arith.constant 0 : index
      %279 = vector.load %arg7[%c0_151, %c0_152] : memref<8x128xf32, #tpu.memory_space<vmem>>, vector<8x128xf32>
      tpu.vector_store %arg7[%c0_151, %c0_152], %278 {strides = array<i32>} : memref<8x128xf32, #tpu.memory_space<vmem>>, vector<8x128xf32>,
    } else {
    }
    return
  }
  func.func @transform_0(%arg0: i32) -> (i32, i32, i32) {
    %c0_i32 = arith.constant 0 : i32
    %c0_i32_0 = arith.constant 0 : i32
    %c0_i32_1 = arith.constant 0 : i32
    return %arg0, %c0_i32, %c0_i32_0 : i32, i32, i32
  }
  func.func @transform_1(%arg0: i32) -> (i32, i32) {
    %c0_i32 = arith.constant 0 : i32
    %c0_i32_0 = arith.constant 0 : i32
    %c0_i32_1 = arith.constant 0 : i32
    return %c0_i32, %c0_i32_0 : i32, i32
  }
  func.func @transform_2(%arg0: i32) -> (i32, i32) {
    %c0_i32 = arith.constant 0 : i32
    %c0_i32_0 = arith.constant 0 : i32
    %c0_i32_1 = arith.constant 0 : i32
    return %c0_i32, %c0_i32_0 : i32, i32
  }
  func.func @transform_3(%arg0: i32) -> (i32, i32) {
    %c0_i32 = arith.constant 0 : i32
    %c0_i32_0 = arith.constant 0 : i32
    %c0_i32_1 = arith.constant 0 : i32
    return %c0_i32, %c0_i32_0 : i32, i32
  }
  func.func @transform_4(%arg0: i32) -> (i32, i32) {
    %c0_i32 = arith.constant 0 : i32
    %c0_i32_0 = arith.constant 0 : i32
    %c0_i32_1 = arith.constant 0 : i32
    return %c0_i32, %c0_i32_0 : i32, i32
  }
  func.func @transform_5(%arg0: i32) -> (i32, i32) {
    %c0_i32 = arith.constant 0 : i32
    %c0_i32_0 = arith.constant 0 : i32
    %c0_i32_1 = arith.constant 0 : i32
    return %c0_i32, %c0_i32_0 : i32, i32
  }
  func.func @transform_6(%arg0: i32) -> (i32, i32) {
    %c0_i32 = arith.constant 0 : i32
    %c0_i32_0 = arith.constant 0 : i32
    %c0_i32_1 = arith.constant 0 : i32
    return %c0_i32, %c0_i32_0 : i32, i32
  }
}

</mosaic_0001>

<llo_original>
// kernel: lstm_forward.1
$region0: #{lstm_forward.1}
  #allocation0 [shape = 'u32[]', space=smem, size = 0x4, offset = 0x4, fixed_abs, tag = 'smem constant byte address 0x4 - core index']
  #allocation1 [shape = 'u32[144,128]{1,0:T(1,128)}', space=vmem, size = 0x12000, scoped, tag = 'internal scratch']
  #allocation2 [shape = 'f32[2,8,128]{2,1,0:T(8,128)}', space=vmem, size = 0x2000, scoped, tag = 'scratch operand']
  #allocation3 [shape = 'f32[2,8,128]{2,1,0:T(8,128)}', space=vmem, size = 0x2000, scoped, tag = 'scratch operand']
  %s0 = inlined_call_operand.vmem [shape: f32[8,8,512], index: 0, kind: input, shape index: {}]
  %s1 = inlined_call_operand.hbm [shape: bf16[128,512], index: 1, kind: input, shape index: {}]
  %s2 = inlined_call_operand.vmem [shape: bf16[256,512], index: 2, kind: input, shape index: {}]
  %s3 = inlined_call_operand.vmem [shape: f32[1,512], index: 3, kind: input, shape index: {}]
  %s4 = inlined_call_operand.hbm [shape: bf16[128,128], index: 4, kind: input, shape index: {}]
  %s5 = inlined_call_operand.vmem [shape: f32[1,128], index: 5, kind: input, shape index: {}]
  %s6 = inlined_call_operand.vmem [shape: f32[8,128], index: 6, kind: output, shape index: {}]
  %s7 = sld [smem:[#allocation0]]
  $region73: #{lstm_forward.1} parent=0
    _
  %s9 = ssub.s32 1, %s7
  %s10 = scalar_select 0, %s9, %s7
  $region1: #{lstm_forward.1} parent=0
    #allocation4 [shape = 'u8[131072]{0}', space=vmem, size = 0x20000, scoped, tag = 'input window, operand 1, single buffered']
    #allocation5 [shape = 's32[2]{0}', space=sflag, size = 0x8, scoped, tag = 'scoped memory for lstm_forward.1']
    #allocation6 [shape = 'u8[32768]{0}', space=vmem, size = 0x8000, scoped, tag = 'input window, operand 4, single buffered']
    #allocation7 [shape = 's32[1]{0}', space=sflag, size = 0x4, scoped, tag = 'scoped memory for lstm_forward.1']
    %11 = vsyncpa [#allocation5], 0
    %12 = vsyncpa [#allocation7], 0
    loop: start=0, step=1, limit=4
    $region2: #{lstm_forward.1} parent=1 // loop_pre_header
      _
    $region3: #{lstm_forward.1} parent=1 // loop_header
      %s14 = sphi 0, %s18
      %p15 = scmp.ge.s32.totalorder %s14, 4
      %s24 = sphi 0, %s26
      %s27 = sphi 0, %s24
      %s28 = sphi 0, %s27
      %s44 = sphi 0, %s28
      %s48 = sphi 0, %s48
      %s50 = sphi 0, %s48
      %s51 = sphi 0, %s50
      %s65 = sphi 0, %s51
      %s69 = sphi 0, %s69
      %s71 = sphi 0, %s69
      %s72 = sphi 0, %s71
      %s86 = sphi 0, %s72
      %s90 = sphi 0, %s90
      %s92 = sphi 0, %s90
      %s93 = sphi 0, %s92
      %s107 = sphi 0, %s93
      %s111 = sphi 0, %s111
      %s113 = sphi 0, %s111
      %s114 = sphi 0, %s113
      %s128 = sphi 0, %s114
      %s132 = sphi 0, %s132
      %s134 = sphi 0, %s132
      %s135 = sphi 0, %s134
      %s149 = sphi 0, %s135
      %s153 = sphi 0, %s153
      %s155 = sphi 0, %s153
      %s156 = sphi 0, %s155
      %s170 = sphi 0, %s156
    $region4: #{lstm_forward.1} parent=1 // loop_header_branch
      %17 = sbr.rel (%p15) target = $region8
    $region5: #{lstm_forward.1} parent=1 // loop_body
      %s19 = ssub.s32 %s14, 1
      %s20 = ssub.s32 %s14, 2
      %s21 = sadd.s32 %s14, 1
      %s22 = ssub.s32 %s14, %s21
      %p23 = scmp.eq.s32.totalorder %s22, 0
      %s25 = sadd.s32 %s24, 1
      %s26 = scalar_select %p23, %s24, %s25
      %p29 = pneg %p23
      %p30 = scmp.eq.s32.totalorder %s14, 1
      %p31 = por %p29, %p30
      %p32 = scmp.ne.s32.totalorder %s24, %s27
      %p33 = scmp.eq.s32.totalorder %s14, 0
      %p34 = por %p32, %p33
      %p35 = scmp.ne.s32.totalorder %s24, %s27
      %p36 = scmp.eq.s32.totalorder %s19, 1
      %p37 = por %p35, %p36
      %p38 = scmp.ne.s32.totalorder %s27, %s28
      %p39 = scmp.eq.s32.totalorder %s19, 0
      %p40 = por %p38, %p39
      %p41 = scmp.ne.s32.totalorder %s27, %s28
      %p42 = scmp.eq.s32.totalorder %s20, 1
      %p43 = por %p41, %p42
      %p45 = scmp.ne.s32.totalorder %s28, %s44
      %p46 = scmp.eq.s32.totalorder %s20, 0
      %p47 = por %p45, %p46
      %s49 = sadd.s32 %s48, 1
      %p52 = scmp.eq.s32.totalorder %s14, 1
      %p53 = scmp.ne.s32.totalorder %s48, %s50
      %p54 = scmp.eq.s32.totalorder %s14, 0
      %p55 = por %p53, %p54
      %p56 = scmp.ne.s32.totalorder %s48, %s50
      %p57 = scmp.eq.s32.totalorder %s19, 1
      %p58 = por %p56, %p57
      %p59 = scmp.ne.s32.totalorder %s50, %s51
      %p60 = scmp.eq.s32.totalorder %s19, 0
      %p61 = por %p59, %p60
      %p62 = scmp.ne.s32.totalorder %s50, %s51
      %p63 = scmp.eq.s32.totalorder %s20, 1
      %p64 = por %p62, %p63
      %p66 = scmp.ne.s32.totalorder %s51, %s65
      %p67 = scmp.eq.s32.totalorder %s20, 0
      %p68 = por %p66, %p67
      %s70 = sadd.s32 %s69, 1
      %p73 = scmp.eq.s32.totalorder %s14, 1
      %p74 = scmp.ne.s32.totalorder %s69, %s71
      %p75 = scmp.eq.s32.totalorder %s14, 0
      %p76 = por %p74, %p75
      %p77 = scmp.ne.s32.totalorder %s69, %s71
      %p78 = scmp.eq.s32.totalorder %s19, 1
      %p79 = por %p77, %p78
      %p80 = scmp.ne.s32.totalorder %s71, %s72
      %p81 = scmp.eq.s32.totalorder %s19, 0
      %p82 = por %p80, %p81
      %p83 = scmp.ne.s32.totalorder %s71, %s72
      %p84 = scmp.eq.s32.totalorder %s20, 1
      %p85 = por %p83, %p84
      %p87 = scmp.ne.s32.totalorder %s72, %s86
      %p88 = scmp.eq.s32.totalorder %s20, 0
      %p89 = por %p87, %p88
      %s91 = sadd.s32 %s90, 1
      %p94 = scmp.eq.s32.totalorder %s14, 1
      %p95 = scmp.ne.s32.totalorder %s90, %s92
      %p96 = scmp.eq.s32.totalorder %s14, 0
      %p97 = por %p95, %p96
      %p98 = scmp.ne.s32.totalorder %s90, %s92
      %p99 = scmp.eq.s32.totalorder %s19, 1
      %p100 = por %p98, %p99
      %p101 = scmp.ne.s32.totalorder %s92, %s93
      %p102 = scmp.eq.s32.totalorder %s19, 0
      %p103 = por %p101, %p102
      %p104 = scmp.ne.s32.totalorder %s92, %s93
      %p105 = scmp.eq.s32.totalorder %s20, 1
      %p106 = por %p104, %p105
      %p108 = scmp.ne.s32.totalorder %s93, %s107
      %p109 = scmp.eq.s32.totalorder %s20, 0
      %p110 = por %p108, %p109
      %s112 = sadd.s32 %s111, 1
      %p115 = scmp.eq.s32.totalorder %s14, 1
      %p116 = scmp.ne.s32.totalorder %s111, %s113
      %p117 = scmp.eq.s32.totalorder %s14, 0
      %p118 = por %p116, %p117
      %p119 = scmp.ne.s32.totalorder %s111, %s113
      %p120 = scmp.eq.s32.totalorder %s19, 1
      %p121 = por %p119, %p120
      %p122 = scmp.ne.s32.totalorder %s113, %s114
      %p123 = scmp.eq.s32.totalorder %s19, 0
      %p124 = por %p122, %p123
      %p125 = scmp.ne.s32.totalorder %s113, %s114
      %p126 = scmp.eq.s32.totalorder %s20, 1
      %p127 = por %p125, %p126
      %p129 = scmp.ne.s32.totalorder %s114, %s128
      %p130 = scmp.eq.s32.totalorder %s20, 0
      %p131 = por %p129, %p130
      %s133 = sadd.s32 %s132, 1
      %p136 = scmp.eq.s32.totalorder %s14, 1
      %p137 = scmp.ne.s32.totalorder %s132, %s134
      %p138 = scmp.eq.s32.totalorder %s14, 0
      %p139 = por %p137, %p138
      %p140 = scmp.ne.s32.totalorder %s132, %s134
      %p141 = scmp.eq.s32.totalorder %s19, 1
      %p142 = por %p140, %p141
      %p143 = scmp.ne.s32.totalorder %s134, %s135
      %p144 = scmp.eq.s32.totalorder %s19, 0
      %p145 = por %p143, %p144
      %p146 = scmp.ne.s32.totalorder %s134, %s135
      %p147 = scmp.eq.s32.totalorder %s20, 1
      %p148 = por %p146, %p147
      %p150 = scmp.ne.s32.totalorder %s135, %s149
      %p151 = scmp.eq.s32.totalorder %s20, 0
      %p152 = por %p150, %p151
      %s154 = sadd.s32 %s153, 1
      %p157 = scmp.eq.s32.totalorder %s14, 1
      %p158 = scmp.ne.s32.totalorder %s153, %s155
      %p159 = scmp.eq.s32.totalorder %s14, 0
      %p160 = por %p158, %p159
      %p161 = scmp.ne.s32.totalorder %s153, %s155
      %p162 = scmp.eq.s32.totalorder %s19, 1
      %p163 = por %p161, %p162
      %p164 = scmp.ne.s32.totalorder %s155, %s156
      %p165 = scmp.eq.s32.totalorder %s19, 0
      %p166 = por %p164, %p165
      %p167 = scmp.ne.s32.totalorder %s155, %s156
      %p168 = scmp.eq.s32.totalorder %s20, 1
      %p169 = por %p167, %p168
      %p171 = scmp.ne.s32.totalorder %s156, %s170
      %p172 = scmp.eq.s32.totalorder %s20, 0
      %p173 = por %p171, %p172
      %p174 = scmp.le.s32.totalorder 1, %s14
      %p175 = scmp.lt.s32.totalorder %s14, 3
      %p176 = pnand %p174, %p175
      %p177 = pneg %p176
      // Predicated region
      $region9: #{lstm_forward.1} parent=5 // pred_check
        _
      $region10: #{lstm_forward.1} parent=5 // pred_check_branch
        %179 = sbr.rel (%p176) target = $region12
      $region11: #{lstm_forward.1} parent=5 // pred_region
        %s180 = ssub.s32 %s14, 1
        // Predicated region
        $region13: #{lstm_forward.1} parent=11 // pred_check
          %p181 = pneg %p61
        $region14: #{lstm_forward.1} parent=11 // pred_check_branch
          %183 = sbr.rel (%p181) target = $region16
        $region15: #{lstm_forward.1} parent=11 // pred_region
          %s185 = ssub.s32 4096, 4096
          %186 = vsyncadd [#allocation5], %s185
          %s187 = sshll.u32 [#allocation4], 4
          %s188 = int_to_ptr.vmem [resolvable:$true] %s187
          %193 = dma.hbm_to_vmem [thread:$0]  %s1, 4096, %s188, [#allocation5], 256, 256, 16
        $region16: #{lstm_forward.1} parent=11 // pred_fallthru
          _
        // Predicated region
        $region17: #{lstm_forward.1} parent=11 // pred_check
          %p194 = pneg %p82
        $region18: #{lstm_forward.1} parent=11 // pred_check_branch
          %196 = sbr.rel (%p194) target = $region20
        $region19: #{lstm_forward.1} parent=11 // pred_region
          _
        $region20: #{lstm_forward.1} parent=11 // pred_fallthru
          _
        // Predicated region
        $region21: #{lstm_forward.1} parent=11 // pred_check
          %p197 = pneg %p103
        $region22: #{lstm_forward.1} parent=11 // pred_check_branch
          %199 = sbr.rel (%p197) target = $region24
        $region23: #{lstm_forward.1} parent=11 // pred_region
          _
        $region24: #{lstm_forward.1} parent=11 // pred_fallthru
          _
        // Predicated region
        $region25: #{lstm_forward.1} parent=11 // pred_check
          %p200 = pneg %p124
        $region26: #{lstm_forward.1} parent=11 // pred_check_branch
          %202 = sbr.rel (%p200) target = $region28
        $region27: #{lstm_forward.1} parent=11 // pred_region
          %s204 = ssub.s32 1024, 1024
          %205 = vsyncadd [#allocation7], %s204
          %s206 = sshll.u32 [#allocation6], 4
          %s207 = int_to_ptr.vmem [resolvable:$true] %s206
          %212 = dma.hbm_to_vmem [thread:$0]  %s4, 1024, %s207, [#allocation7], 64, 64, 4
        $region28: #{lstm_forward.1} parent=11 // pred_fallthru
          _
        // Predicated region
        $region29: #{lstm_forward.1} parent=11 // pred_check
          %p213 = pneg %p145
        $region30: #{lstm_forward.1} parent=11 // pred_check_branch
          %215 = sbr.rel (%p213) target = $region32
        $region31: #{lstm_forward.1} parent=11 // pred_region
          _
        $region32: #{lstm_forward.1} parent=11 // pred_fallthru
          _
      $region12: #{lstm_forward.1} parent=5 // pred_fallthru
        _
      %p216 = scmp.lt.s32.totalorder %s14, 2
      // Predicated region
      $region33: #{lstm_forward.1} parent=5 // pred_check
        %p217 = pneg %p216
      $region34: #{lstm_forward.1} parent=5 // pred_check_branch
        %219 = sbr.rel (%p217) target = $region36
      $region35: #{lstm_forward.1} parent=5 // pred_region
        // Predicated region
        $region37: #{lstm_forward.1} parent=35 // pred_check
          %p220 = pneg %p34
        $region38: #{lstm_forward.1} parent=35 // pred_check_branch
          %222 = sbr.rel (%p220) target = $region40
        $region39: #{lstm_forward.1} parent=35 // pred_region
          %s223 = smul.u32 4, %s14
          %p224 = scmp.lt.s32.totalorder %s223, 7
          %s225 = scalar_select %p224, %s223, 7
          %s226 = smul.addr %s225, 4
          %s227 = smul.addr %s226, 8
          %s228 = scalar_lea.vmem %s0, %s227
          %s229 = smul.u32 4, %s14
        $region40: #{lstm_forward.1} parent=35 // pred_fallthru
          _
      $region36: #{lstm_forward.1} parent=5 // pred_fallthru
        _
      %p230 = scmp.le.s32.totalorder 1, %s14
      %p231 = scmp.lt.s32.totalorder %s14, 3
      %p232 = pnand %p230, %p231
      %p233 = pneg %p232
      // Predicated region
      $region41: #{lstm_forward.1} parent=5 // pred_check
        _
      $region42: #{lstm_forward.1} parent=5 // pred_check_branch
        %235 = sbr.rel (%p232) target = $region44
      $region43: #{lstm_forward.1} parent=5 // pred_region
        %s236 = ssub.s32 %s14, 1
        // Predicated region
        $region45: #{lstm_forward.1} parent=43 // pred_check
          %p237 = pneg %p61
        $region46: #{lstm_forward.1} parent=43 // pred_check_branch
          %239 = sbr.rel (%p237) target = $region48
        $region47: #{lstm_forward.1} parent=43 // pred_region
          %240 = dma.done [#allocation5], 4096
        $region48: #{lstm_forward.1} parent=43 // pred_fallthru
          _
        // Predicated region
        $region49: #{lstm_forward.1} parent=43 // pred_check
          %p241 = pneg %p124
        $region50: #{lstm_forward.1} parent=43 // pred_check_branch
          %243 = sbr.rel (%p241) target = $region52
        $region51: #{lstm_forward.1} parent=43 // pred_region
          %244 = dma.done [#allocation7], 1024
        $region52: #{lstm_forward.1} parent=43 // pred_fallthru
          _
        %s245 = smul.u32 4, %s19
        %p246 = scmp.lt.s32.totalorder %s245, 7
        %s247 = scalar_select %p246, %s245, 7
        %s248 = smul.addr %s247, 4
        %s249 = smul.addr %s248, 8
        %s250 = scalar_lea.vmem %s0, %s249
        %p251 = pneg %p40
        %p252 = pneg %p37
        %p253 = pneg %p61
        %p254 = pneg %p58
        %p255 = pneg %p82
        %p256 = pneg %p79
        %p257 = pneg %p103
        %p258 = pneg %p100
        %p259 = pneg %p124
        %p260 = pneg %p121
        %p261 = pneg %p145
        %p262 = pneg %p142
        %p263 = pneg %p166
        %p264 = pneg %p163
        %s265 = smul.u32 4, %s19
        %p266 = scmp.lt.s32.totalorder %s265, 7
        %s267 = scalar_select %p266, %s265, 7
        %s268 = smul.addr %s267, 4
        %s269 = smul.addr %s268, 8
        %s270 = scalar_lea.vmem %s0, %s269
        %s271 = smul.u32 4, %s19
        %p273 = scmp.eq.s32.totalorder %s19, 0
        // Predicated region
        $region53: #{lstm_forward.1} parent=43 // pred_check
          %p274 = pneg %p273
        $region54: #{lstm_forward.1} parent=43 // pred_check_branch
          %276 = sbr.rel (%p274) target = $region56
        $region55: #{lstm_forward.1} parent=43 // pred_region
          %277 = vst [vmem:[#allocation2] sm:$0xff] 0.0
          %278 = vst [vmem:[#allocation2 + $0x8] sm:$0xff] 0.0
          %279 = vst [vmem:[#allocation3] sm:$0xff] 0.0
          %280 = vst [vmem:[#allocation3 + $0x8] sm:$0xff] 0.0
        $region56: #{lstm_forward.1} parent=43 // pred_fallthru
          _
        %v281 = vld [vmem:[#allocation4] sm:$0xff]
        %v282 = vld [vmem:[#allocation4 + $0x8] sm:$0xff]
        %v283 = vld [vmem:[#allocation4 + $0x10] sm:$0xff]
        %v284 = vld [vmem:[#allocation4 + $0x18] sm:$0xff]
        %v285 = vld [vmem:[#allocation4 + $0x20] sm:$0xff]
        %v286 = vld [vmem:[#allocation4 + $0x28] sm:$0xff]
        %v287 = vld [vmem:[#allocation4 + $0x30] sm:$0xff]
        %v288 = vld [vmem:[#allocation4 + $0x38] sm:$0xff]
        %v289 = vld [vmem:[#allocation4 + $0x40] sm:$0xff]
        %v290 = vld [vmem:[#allocation4 + $0x48] sm:$0xff]
        %v291 = vld [vmem:[#allocation4 + $0x50] sm:$0xff]
        %v292 = vld [vmem:[#allocation4 + $0x58] sm:$0xff]
        %v293 = vld [vmem:[#allocation4 + $0x60] sm:$0xff]
        %v294 = vld [vmem:[#allocation4 + $0x68] sm:$0xff]
        %v295 = vld [vmem:[#allocation4 + $0x70] sm:$0xff]
        %v296 = vld [vmem:[#allocation4 + $0x78] sm:$0xff]
        %v297 = vld [vmem:[#allocation4 + $0x80] sm:$0xff]
        %v298 = vld [vmem:[#allocation4 + $0x88] sm:$0xff]
        %v299 = vld [vmem:[#allocation4 + $0x90] sm:$0xff]
        %v300 = vld [vmem:[#allocation4 + $0x98] sm:$0xff]
        %v301 = vld [vmem:[#allocation4 + $0xa0] sm:$0xff]
        %v302 = vld [vmem:[#allocation4 + $0xa8] sm:$0xff]
        %v303 = vld [vmem:[#allocation4 + $0xb0] sm:$0xff]
        %v304 = vld [vmem:[#allocation4 + $0xb8] sm:$0xff]
        %v305 = vld [vmem:[#allocation4 + $0xc0] sm:$0xff]
        %v306 = vld [vmem:[#allocation4 + $0xc8] sm:$0xff]
        %v307 = vld [vmem:[#allocation4 + $0xd0] sm:$0xff]
        %v308 = vld [vmem:[#allocation4 + $0xd8] sm:$0xff]
        %v309 = vld [vmem:[#allocation4 + $0xe0] sm:$0xff]
        %v310 = vld [vmem:[#allocation4 + $0xe8] sm:$0xff]
        %v311 = vld [vmem:[#allocation4 + $0xf0] sm:$0xff]
        %v312 = vld [vmem:[#allocation4 + $0xf8] sm:$0xff]
        %v313 = vld [vmem:[%s2] sm:$0xff]
        %v314 = vld [vmem:[%s2 + $0x8] sm:$0xff]
        %v315 = vld [vmem:[%s2 + $0x10] sm:$0xff]
        %v316 = vld [vmem:[%s2 + $0x18] sm:$0xff]
        %v317 = vld [vmem:[%s2 + $0x20] sm:$0xff]
        %v318 = vld [vmem:[%s2 + $0x28] sm:$0xff]
        %v319 = vld [vmem:[%s2 + $0x30] sm:$0xff]
        %v320 = vld [vmem:[%s2 + $0x38] sm:$0xff]
        %v321 = vld [vmem:[%s2 + $0x40] sm:$0xff]
        %v322 = vld [vmem:[%s2 + $0x48] sm:$0xff]
        %v323 = vld [vmem:[%s2 + $0x50] sm:$0xff]
        %v324 = vld [vmem:[%s2 + $0x58] sm:$0xff]
        %v325 = vld [vmem:[%s2 + $0x60] sm:$0xff]
        %v326 = vld [vmem:[%s2 + $0x68] sm:$0xff]
        %v327 = vld [vmem:[%s2 + $0x70] sm:$0xff]
        %v328 = vld [vmem:[%s2 + $0x78] sm:$0xff]
        %v329 = vld [vmem:[%s2 + $0x80] sm:$0xff]
        %v330 = vld [vmem:[%s2 + $0x88] sm:$0xff]
        %v331 = vld [vmem:[%s2 + $0x90] sm:$0xff]
        %v332 = vld [vmem:[%s2 + $0x98] sm:$0xff]
        %v333 = vld [vmem:[%s2 + $0xa0] sm:$0xff]
        %v334 = vld [vmem:[%s2 + $0xa8] sm:$0xff]
        %v335 = vld [vmem:[%s2 + $0xb0] sm:$0xff]
        %v336 = vld [vmem:[%s2 + $0xb8] sm:$0xff]
        %v337 = vld [vmem:[%s2 + $0xc0] sm:$0xff]
        %v338 = vld [vmem:[%s2 + $0xc8] sm:$0xff]
        %v339 = vld [vmem:[%s2 + $0xd0] sm:$0xff]
        %v340 = vld [vmem:[%s2 + $0xd8] sm:$0xff]
        %v341 = vld [vmem:[%s2 + $0xe0] sm:$0xff]
        %v342 = vld [vmem:[%s2 + $0xe8] sm:$0xff]
        %v343 = vld [vmem:[%s2 + $0xf0] sm:$0xff]
        %v344 = vld [vmem:[%s2 + $0xf8] sm:$0xff]
        %v345 = vld [vmem:[%s2 + $0x100] sm:$0xff]
        %v346 = vld [vmem:[%s2 + $0x108] sm:$0xff]
        %v347 = vld [vmem:[%s2 + $0x110] sm:$0xff]
        %v348 = vld [vmem:[%s2 + $0x118] sm:$0xff]
        %v349 = vld [vmem:[%s2 + $0x120] sm:$0xff]
        %v350 = vld [vmem:[%s2 + $0x128] sm:$0xff]
        %v351 = vld [vmem:[%s2 + $0x130] sm:$0xff]
        %v352 = vld [vmem:[%s2 + $0x138] sm:$0xff]
        %v353 = vld [vmem:[%s2 + $0x140] sm:$0xff]
        %v354 = vld [vmem:[%s2 + $0x148] sm:$0xff]
        %v355 = vld [vmem:[%s2 + $0x150] sm:$0xff]
        %v356 = vld [vmem:[%s2 + $0x158] sm:$0xff]
        %v357 = vld [vmem:[%s2 + $0x160] sm:$0xff]
        %v358 = vld [vmem:[%s2 + $0x168] sm:$0xff]
        %v359 = vld [vmem:[%s2 + $0x170] sm:$0xff]
        %v360 = vld [vmem:[%s2 + $0x178] sm:$0xff]
        %v361 = vld [vmem:[%s2 + $0x180] sm:$0xff]
        %v362 = vld [vmem:[%s2 + $0x188] sm:$0xff]
        %v363 = vld [vmem:[%s2 + $0x190] sm:$0xff]
        %v364 = vld [vmem:[%s2 + $0x198] sm:$0xff]
        %v365 = vld [vmem:[%s2 + $0x1a0] sm:$0xff]
        %v366 = vld [vmem:[%s2 + $0x1a8] sm:$0xff]
        %v367 = vld [vmem:[%s2 + $0x1b0] sm:$0xff]
        %v368 = vld [vmem:[%s2 + $0x1b8] sm:$0xff]
        %v369 = vld [vmem:[%s2 + $0x1c0] sm:$0xff]
        %v370 = vld [vmem:[%s2 + $0x1c8] sm:$0xff]
        %v371 = vld [vmem:[%s2 + $0x1d0] sm:$0xff]
        %v372 = vld [vmem:[%s2 + $0x1d8] sm:$0xff]
        %v373 = vld [vmem:[%s2 + $0x1e0] sm:$0xff]
        %v374 = vld [vmem:[%s2 + $0x1e8] sm:$0xff]
        %v375 = vld [vmem:[%s2 + $0x1f0] sm:$0xff]
        %v376 = vld [vmem:[%s2 + $0x1f8] sm:$0xff]
        %v377 = vld [vmem:[%s3] sm:$0xf]
        %v379 = vlaneseq
        %v380 = vshrl.u32 %v379, 7
        %v381 = vsub.s32 0, %v380
        %v382 = vrot.slane %v377, %v381
        %v383 = vlaneseq
        %v384 = vshrl.u32 %v383, 7
        %v385 = vsub.s32 1, %v384
        %v386 = vrot.slane %v377, %v385
        %v387 = vlaneseq
        %v388 = vshrl.u32 %v387, 7
        %v389 = vsub.s32 2, %v388
        %v390 = vrot.slane %v377, %v389
        %v391 = vlaneseq
        %v392 = vshrl.u32 %v391, 7
        %v393 = vsub.s32 3, %v392
        %v394 = vrot.slane %v377, %v393
        %v399 = vld [vmem:[%s270] sm:$0xff]
        %v400 = vld [vmem:[%s270 + $0x8] sm:$0xff]
        %v401 = vld [vmem:[%s270 + $0x10] sm:$0xff]
        %v402 = vld [vmem:[%s270 + $0x18] sm:$0xff]
        %v403 = vld [vmem:[#allocation2] sm:$0xff]
        %v404 = vpack.c.bf16 %v403, %v403
        %v437 = vunpack.c.l.b16 %v281
        %v438 = vunpack.c.h.b16 %v281
        %v439 = vunpack.c.l.b16 %v282
        %v440 = vunpack.c.h.b16 %v282
        %v441 = vunpack.c.l.b16 %v283
        %v442 = vunpack.c.h.b16 %v283
        %v443 = vunpack.c.l.b16 %v284
        %v444 = vunpack.c.h.b16 %v284
        %v445 = vunpack.c.l.b16 %v285
        %v446 = vunpack.c.h.b16 %v285
        %v447 = vunpack.c.l.b16 %v286
        %v448 = vunpack.c.h.b16 %v286
        %v449 = vunpack.c.l.b16 %v287
        %v450 = vunpack.c.h.b16 %v287
        %v451 = vunpack.c.l.b16 %v288
        %v452 = vunpack.c.h.b16 %v288
        %v453 = vunpack.c.l.b16 %v289
        %v454 = vunpack.c.h.b16 %v289
        %v455 = vunpack.c.l.b16 %v290
        %v456 = vunpack.c.h.b16 %v290
        %v457 = vunpack.c.l.b16 %v291
        %v458 = vunpack.c.h.b16 %v291
        %v459 = vunpack.c.l.b16 %v292
        %v460 = vunpack.c.h.b16 %v292
        %v461 = vunpack.c.l.b16 %v293
        %v462 = vunpack.c.h.b16 %v293
        %v463 = vunpack.c.l.b16 %v294
        %v464 = vunpack.c.h.b16 %v294
        %v465 = vunpack.c.l.b16 %v295
        %v466 = vunpack.c.h.b16 %v295
        %v467 = vunpack.c.l.b16 %v296
        %v468 = vunpack.c.h.b16 %v296
        %v469 = vunpack.c.l.b16 %v297
        %v470 = vunpack.c.h.b16 %v297
        %v471 = vunpack.c.l.b16 %v298
        %v472 = vunpack.c.h.b16 %v298
        %v473 = vunpack.c.l.b16 %v299
        %v474 = vunpack.c.h.b16 %v299
        %v475 = vunpack.c.l.b16 %v300
        %v476 = vunpack.c.h.b16 %v300
        %v477 = vunpack.c.l.b16 %v301
        %v478 = vunpack.c.h.b16 %v301
        %v479 = vunpack.c.l.b16 %v302
        %v480 = vunpack.c.h.b16 %v302
        %v481 = vunpack.c.l.b16 %v303
        %v482 = vunpack.c.h.b16 %v303
        %v483 = vunpack.c.l.b16 %v304
        %v484 = vunpack.c.h.b16 %v304
        %v485 = vunpack.c.l.b16 %v305
        %v486 = vunpack.c.h.b16 %v305
        %v487 = vunpack.c.l.b16 %v306
        %v488 = vunpack.c.h.b16 %v306
        %v489 = vunpack.c.l.b16 %v307
        %v490 = vunpack.c.h.b16 %v307
        %v491 = vunpack.c.l.b16 %v308
        %v492 = vunpack.c.h.b16 %v308
        %v493 = vunpack.c.l.b16 %v309
        %v494 = vunpack.c.h.b16 %v309
        %v495 = vunpack.c.l.b16 %v310
        %v496 = vunpack.c.h.b16 %v310
        %v497 = vunpack.c.l.b16 %v311
        %v498 = vunpack.c.h.b16 %v311
        %v499 = vunpack.c.l.b16 %v312
        %v500 = vunpack.c.h.b16 %v312
        %v501 = vpack.c.b16 %v441, %v437
        %v502 = vpack.c.b16 %v442, %v438
        %v503 = vpack.c.b16 %v443, %v439
        %v504 = vpack.c.b16 %v444, %v440
        %v505 = vpack.c.b16 %v449, %v445
        %v506 = vpack.c.b16 %v450, %v446
        %v507 = vpack.c.b16 %v451, %v447
        %v508 = vpack.c.b16 %v452, %v448
        %v509 = vpack.c.b16 %v457, %v453
        %v510 = vpack.c.b16 %v458, %v454
        %v511 = vpack.c.b16 %v459, %v455
        %v512 = vpack.c.b16 %v460, %v456
        %v513 = vpack.c.b16 %v465, %v461
        %v514 = vpack.c.b16 %v466, %v462
        %v515 = vpack.c.b16 %v467, %v463
        %v516 = vpack.c.b16 %v468, %v464
        %v517 = vpack.c.b16 %v473, %v469
        %v518 = vpack.c.b16 %v474, %v470
        %v519 = vpack.c.b16 %v475, %v471
        %v520 = vpack.c.b16 %v476, %v472
        %v521 = vpack.c.b16 %v481, %v477
        %v522 = vpack.c.b16 %v482, %v478
        %v523 = vpack.c.b16 %v483, %v479
        %v524 = vpack.c.b16 %v484, %v480
        %v525 = vpack.c.b16 %v489, %v485
        %v526 = vpack.c.b16 %v490, %v486
        %v527 = vpack.c.b16 %v491, %v487
        %v528 = vpack.c.b16 %v492, %v488
        %v529 = vpack.c.b16 %v497, %v493
        %v530 = vpack.c.b16 %v498, %v494
        %v531 = vpack.c.b16 %v499, %v495
        %v532 = vpack.c.b16 %v500, %v496
        %565 = vmatprep.subr.bf16.mxu0 %v502
        %566 = vmatpush1.bf16.msra.mxu0 %v501
        %567 = vmatprep.subr.bf16.mxu0 %v506
        %568 = vmatpush1.bf16.msra.mxu0 %v505
        %569 = vmatprep.subr.bf16.mxu0 %v510
        %570 = vmatpush1.bf16.msra.mxu0 %v509
        %571 = vmatprep.subr.bf16.mxu0 %v514
        %572 = vmatpush1.bf16.msra.mxu0 %v513
        %573 = vmatprep.subr.bf16.mxu0 %v518
        %574 = vmatpush1.bf16.msra.mxu0 %v517
        %575 = vmatprep.subr.bf16.mxu0 %v522
        %576 = vmatpush1.bf16.msra.mxu0 %v521
        %577 = vmatprep.subr.bf16.mxu0 %v526
        %578 = vmatpush1.bf16.msra.mxu0 %v525
        %579 = vmatprep.subr.bf16.mxu0 %v530
        %580 = vmatpush1.bf16.msra.mxu0 %v529
        %581 = vmatprep.subr.bf16.mxu0 0
        %582 = vmatpush1.bf16.msra.mxu0 0
        %583 = vmatprep.subr.bf16.mxu0 0
        %584 = vmatpush1.bf16.msra.mxu0 0
        %585 = vmatprep.subr.bf16.mxu0 0
        %586 = vmatpush1.bf16.msra.mxu0 0
        %587 = vmatprep.subr.bf16.mxu0 0
        %588 = vmatpush1.bf16.msra.mxu0 0
        %589 = vmatprep.subr.bf16.mxu0 0
        %590 = vmatpush1.bf16.msra.mxu0 0
        %591 = vmatprep.subr.bf16.mxu0 0
        %592 = vmatpush1.bf16.msra.mxu0 0
        %593 = vmatprep.subr.bf16.mxu0 0
        %594 = vmatpush1.bf16.msra.mxu0 0
        %595 = vmatprep.subr.bf16.mxu0 0
        %596 = vmatpush1.bf16.msra.mxu0 0
        %597 = vmatprep.mubr.bf16.mxu0 0
        %598 = vmatmul.mubr.bf16.gmra.mrb[0].mxu0 %v404
        %v599 = vpop.f32.mrb[0].mxu0
        %v600 = vadd.f32 0.0, %v599
        %v601 = vpop.f32.mrb[0].mxu0
        %v602 = vadd.f32 0.0, %v601
        %v603 = vpop.f32.mrb[0].mxu0
        %v604 = vpop.f32.mrb[0].mxu0
        %605 = vdwg.mxu0
        %606 = vmatprep.subr.bf16.mxu0 %v504
        %607 = vmatpush1.bf16.msra.mxu0 %v503
        %608 = vmatprep.subr.bf16.mxu0 %v508
        %609 = vmatpush1.bf16.msra.mxu0 %v507
        %610 = vmatprep.subr.bf16.mxu0 %v512
        %611 = vmatpush1.bf16.msra.mxu0 %v511
        %612 = vmatprep.subr.bf16.mxu0 %v516
        %613 = vmatpush1.bf16.msra.mxu0 %v515
        %614 = vmatprep.subr.bf16.mxu0 %v520
        %615 = vmatpush1.bf16.msra.mxu0 %v519
        %616 = vmatprep.subr.bf16.mxu0 %v524
        %617 = vmatpush1.bf16.msra.mxu0 %v523
        %618 = vmatprep.subr.bf16.mxu0 %v528
        %619 = vmatpush1.bf16.msra.mxu0 %v527
        %620 = vmatprep.subr.bf16.mxu0 %v532
        %621 = vmatpush1.bf16.msra.mxu0 %v531
        %622 = vmatprep.subr.bf16.mxu0 0
        %623 = vmatpush1.bf16.msra.mxu0 0
        %624 = vmatprep.subr.bf16.mxu0 0
        %625 = vmatpush1.bf16.msra.mxu0 0
        %626 = vmatprep.subr.bf16.mxu0 0
        %627 = vmatpush1.bf16.msra.mxu0 0
        %628 = vmatprep.subr.bf16.mxu0 0
        %629 = vmatpush1.bf16.msra.mxu0 0
        %630 = vmatprep.subr.bf16.mxu0 0
        %631 = vmatpush1.bf16.msra.mxu0 0
        %632 = vmatprep.subr.bf16.mxu0 0
        %633 = vmatpush1.bf16.msra.mxu0 0
        %634 = vmatprep.subr.bf16.mxu0 0
        %635 = vmatpush1.bf16.msra.mxu0 0
        %636 = vmatprep.subr.bf16.mxu0 0
        %637 = vmatpush1.bf16.msra.mxu0 0
        %638 = vmatprep.mubr.bf16.mxu0 0
        %639 = vmatmul.mubr.bf16.gmra.mrb[0].mxu0 %v404
        %v640 = vpop.f32.mrb[0].mxu0
        %v641 = vadd.f32 0.0, %v640
        %v642 = vpop.f32.mrb[0].mxu0
        %v643 = vadd.f32 0.0, %v642
        %v644 = vpop.f32.mrb[0].mxu0
        %v645 = vpop.f32.mrb[0].mxu0
        %646 = vdwg.mxu0
        %v647 = vadd.f32 %v399, %v600
        %v648 = vadd.f32 %v400, %v602
        %v649 = vadd.f32 %v401, %v641
        %v650 = vadd.f32 %v402, %v643
        %v651 = vld [vmem:[#allocation3] sm:$0xff]
        %v652 = vmul.f32 %v647, 0.5
        %v653 = vmul.f32 %v648, 0.5
        %v654 = vmul.f32 %v649, 0.5
        %v655 = vtanh.pop %v652
        %v656 = vtanh.pop %v653
        %v657 = vtanh.pop %v654
        %v658 = vadd.f32 %v655, 1.0
        %v659 = vadd.f32 %v656, 1.0
        %v660 = vadd.f32 %v657, 1.0
        %v661 = vmul.f32 %v658, 0.5
        %v662 = vmul.f32 %v659, 0.5
        %v663 = vmul.f32 %v660, 0.5
        %v664 = vtanh.pop %v650
        %v665 = vmul.f32 %v662, %v651
        %v666 = vmul.f32 %v661, %v664
        %v667 = vadd.f32 %v665, %v666
        %v668 = vtanh.pop %v667
        %v669 = vmul.f32 %v663, %v668
        %670 = vst [vmem:[#allocation2] sm:$0xff] %v669
        %671 = vst [vmem:[#allocation3] sm:$0xff] %v667
        %s672 = scalar_lea.vmem [#allocation2], 8
        %v673 = vld [vmem:[%s672] sm:$0xff]
        %v674 = vpack.c.bf16 %v669, %v669
        %v675 = vpack.c.bf16 %v673, %v673
        %v740 = vunpack.c.l.b16 %v313
        %v741 = vunpack.c.h.b16 %v313
        %v742 = vunpack.c.l.b16 %v314
        %v743 = vunpack.c.h.b16 %v314
        %v744 = vunpack.c.l.b16 %v315
        %v745 = vunpack.c.h.b16 %v315
        %v746 = vunpack.c.l.b16 %v316
        %v747 = vunpack.c.h.b16 %v316
        %v748 = vunpack.c.l.b16 %v317
        %v749 = vunpack.c.h.b16 %v317
        %v750 = vunpack.c.l.b16 %v318
        %v751 = vunpack.c.h.b16 %v318
        %v752 = vunpack.c.l.b16 %v319
        %v753 = vunpack.c.h.b16 %v319
        %v754 = vunpack.c.l.b16 %v320
        %v755 = vunpack.c.h.b16 %v320
        %v756 = vunpack.c.l.b16 %v321
        %v757 = vunpack.c.h.b16 %v321
        %v758 = vunpack.c.l.b16 %v322
        %v759 = vunpack.c.h.b16 %v322
        %v760 = vunpack.c.l.b16 %v323
        %v761 = vunpack.c.h.b16 %v323
        %v762 = vunpack.c.l.b16 %v324
        %v763 = vunpack.c.h.b16 %v324
        %v764 = vunpack.c.l.b16 %v325
        %v765 = vunpack.c.h.b16 %v325
        %v766 = vunpack.c.l.b16 %v326
        %v767 = vunpack.c.h.b16 %v326
        %v768 = vunpack.c.l.b16 %v327
        %v769 = vunpack.c.h.b16 %v327
        %v770 = vunpack.c.l.b16 %v328
        %v771 = vunpack.c.h.b16 %v328
        %v772 = vunpack.c.l.b16 %v329
        %v773 = vunpack.c.h.b16 %v329
        %v774 = vunpack.c.l.b16 %v330
        %v775 = vunpack.c.h.b16 %v330
        %v776 = vunpack.c.l.b16 %v331
        %v777 = vunpack.c.h.b16 %v331
        %v778 = vunpack.c.l.b16 %v332
        %v779 = vunpack.c.h.b16 %v332
        %v780 = vunpack.c.l.b16 %v333
        %v781 = vunpack.c.h.b16 %v333
        %v782 = vunpack.c.l.b16 %v334
        %v783 = vunpack.c.h.b16 %v334
        %v784 = vunpack.c.l.b16 %v335
        %v785 = vunpack.c.h.b16 %v335
        %v786 = vunpack.c.l.b16 %v336
        %v787 = vunpack.c.h.b16 %v336
        %v788 = vunpack.c.l.b16 %v337
        %v789 = vunpack.c.h.b16 %v337
        %v790 = vunpack.c.l.b16 %v338
        %v791 = vunpack.c.h.b16 %v338
        %v792 = vunpack.c.l.b16 %v339
        %v793 = vunpack.c.h.b16 %v339
        %v794 = vunpack.c.l.b16 %v340
        %v795 = vunpack.c.h.b16 %v340
        %v796 = vunpack.c.l.b16 %v341
        %v797 = vunpack.c.h.b16 %v341
        %v798 = vunpack.c.l.b16 %v342
        %v799 = vunpack.c.h.b16 %v342
        %v800 = vunpack.c.l.b16 %v343
        %v801 = vunpack.c.h.b16 %v343
        %v802 = vunpack.c.l.b16 %v344
        %v803 = vunpack.c.h.b16 %v344
        %v804 = vunpack.c.l.b16 %v345
        %v805 = vunpack.c.h.b16 %v345
        %v806 = vunpack.c.l.b16 %v346
        %v807 = vunpack.c.h.b16 %v346
        %v808 = vunpack.c.l.b16 %v347
        %v809 = vunpack.c.h.b16 %v347
        %v810 = vunpack.c.l.b16 %v348
        %v811 = vunpack.c.h.b16 %v348
        %v812 = vunpack.c.l.b16 %v349
        %v813 = vunpack.c.h.b16 %v349
        %v814 = vunpack.c.l.b16 %v350
        %v815 = vunpack.c.h.b16 %v350
        %v816 = vunpack.c.l.b16 %v351
        %v817 = vunpack.c.h.b16 %v351
        %v818 = vunpack.c.l.b16 %v352
        %v819 = vunpack.c.h.b16 %v352
        %v820 = vunpack.c.l.b16 %v353
        %v821 = vunpack.c.h.b16 %v353
        %v822 = vunpack.c.l.b16 %v354
        %v823 = vunpack.c.h.b16 %v354
        %v824 = vunpack.c.l.b16 %v355
        %v825 = vunpack.c.h.b16 %v355
        %v826 = vunpack.c.l.b16 %v356
        %v827 = vunpack.c.h.b16 %v356
        %v828 = vunpack.c.l.b16 %v357
        %v829 = vunpack.c.h.b16 %v357
        %v830 = vunpack.c.l.b16 %v358
        %v831 = vunpack.c.h.b16 %v358
        %v832 = vunpack.c.l.b16 %v359
        %v833 = vunpack.c.h.b16 %v359
        %v834 = vunpack.c.l.b16 %v360
        %v835 = vunpack.c.h.b16 %v360
        %v836 = vunpack.c.l.b16 %v361
        %v837 = vunpack.c.h.b16 %v361
        %v838 = vunpack.c.l.b16 %v362
        %v839 = vunpack.c.h.b16 %v362
        %v840 = vunpack.c.l.b16 %v363
        %v841 = vunpack.c.h.b16 %v363
        %v842 = vunpack.c.l.b16 %v364
        %v843 = vunpack.c.h.b16 %v364
        %v844 = vunpack.c.l.b16 %v365
        %v845 = vunpack.c.h.b16 %v365
        %v846 = vunpack.c.l.b16 %v366
        %v847 = vunpack.c.h.b16 %v366
        %v848 = vunpack.c.l.b16 %v367
        %v849 = vunpack.c.h.b16 %v367
        %v850 = vunpack.c.l.b16 %v368
        %v851 = vunpack.c.h.b16 %v368
        %v852 = vunpack.c.l.b16 %v369
        %v853 = vunpack.c.h.b16 %v369
        %v854 = vunpack.c.l.b16 %v370
        %v855 = vunpack.c.h.b16 %v370
        %v856 = vunpack.c.l.b16 %v371
        %v857 = vunpack.c.h.b16 %v371
        %v858 = vunpack.c.l.b16 %v372
        %v859 = vunpack.c.h.b16 %v372
        %v860 = vunpack.c.l.b16 %v373
        %v861 = vunpack.c.h.b16 %v373
        %v862 = vunpack.c.l.b16 %v374
        %v863 = vunpack.c.h.b16 %v374
        %v864 = vunpack.c.l.b16 %v375
        %v865 = vunpack.c.h.b16 %v375
        %v866 = vunpack.c.l.b16 %v376
        %v867 = vunpack.c.h.b16 %v376
        %v868 = vpack.c.b16 %v744, %v740
        %v869 = vpack.c.b16 %v745, %v741
        %v870 = vpack.c.b16 %v746, %v742
        %v871 = vpack.c.b16 %v747, %v743
        %v872 = vpack.c.b16 %v752, %v748
        %v873 = vpack.c.b16 %v753, %v749
        %v874 = vpack.c.b16 %v754, %v750
        %v875 = vpack.c.b16 %v755, %v751
        %v876 = vpack.c.b16 %v760, %v756
        %v877 = vpack.c.b16 %v761, %v757
        %v878 = vpack.c.b16 %v762, %v758
        %v879 = vpack.c.b16 %v763, %v759
        %v880 = vpack.c.b16 %v768, %v764
        %v881 = vpack.c.b16 %v769, %v765
        %v882 = vpack.c.b16 %v770, %v766
        %v883 = vpack.c.b16 %v771, %v767
        %v884 = vpack.c.b16 %v776, %v772
        %v885 = vpack.c.b16 %v777, %v773
        %v886 = vpack.c.b16 %v778, %v774
        %v887 = vpack.c.b16 %v779, %v775
        %v888 = vpack.c.b16 %v784, %v780
        %v889 = vpack.c.b16 %v785, %v781
        %v890 = vpack.c.b16 %v786, %v782
        %v891 = vpack.c.b16 %v787, %v783
        %v892 = vpack.c.b16 %v792, %v788
        %v893 = vpack.c.b16 %v793, %v789
        %v894 = vpack.c.b16 %v794, %v790
        %v895 = vpack.c.b16 %v795, %v791
        %v896 = vpack.c.b16 %v800, %v796
        %v897 = vpack.c.b16 %v801, %v797
        %v898 = vpack.c.b16 %v802, %v798
        %v899 = vpack.c.b16 %v803, %v799
        %v900 = vpack.c.b16 %v808, %v804
        %v901 = vpack.c.b16 %v809, %v805
        %v902 = vpack.c.b16 %v810, %v806
        %v903 = vpack.c.b16 %v811, %v807
        %v904 = vpack.c.b16 %v816, %v812
        %v905 = vpack.c.b16 %v817, %v813
        %v906 = vpack.c.b16 %v818, %v814
        %v907 = vpack.c.b16 %v819, %v815
        %v908 = vpack.c.b16 %v824, %v820
        %v909 = vpack.c.b16 %v825, %v821
        %v910 = vpack.c.b16 %v826, %v822
        %v911 = vpack.c.b16 %v827, %v823
        %v912 = vpack.c.b16 %v832, %v828
        %v913 = vpack.c.b16 %v833, %v829
        %v914 = vpack.c.b16 %v834, %v830
        %v915 = vpack.c.b16 %v835, %v831
        %v916 = vpack.c.b16 %v840, %v836
        %v917 = vpack.c.b16 %v841, %v837
        %v918 = vpack.c.b16 %v842, %v838
        %v919 = vpack.c.b16 %v843, %v839
        %v920 = vpack.c.b16 %v848, %v844
        %v921 = vpack.c.b16 %v849, %v845
        %v922 = vpack.c.b16 %v850, %v846
        %v923 = vpack.c.b16 %v851, %v847
        %v924 = vpack.c.b16 %v856, %v852
        %v925 = vpack.c.b16 %v857, %v853
        %v926 = vpack.c.b16 %v858, %v854
        %v927 = vpack.c.b16 %v859, %v855
        %v928 = vpack.c.b16 %v864, %v860
        %v929 = vpack.c.b16 %v865, %v861
        %v930 = vpack.c.b16 %v866, %v862
        %v931 = vpack.c.b16 %v867, %v863
        %996 = vmatprep.subr.bf16.mxu0 %v869
        %997 = vmatpush1.bf16.msra.mxu0 %v868
        %998 = vmatprep.subr.bf16.mxu0 %v873
        %999 = vmatpush1.bf16.msra.mxu0 %v872
        %1000 = vmatprep.subr.bf16.mxu0 %v877
        %1001 = vmatpush1.bf16.msra.mxu0 %v876
        %1002 = vmatprep.subr.bf16.mxu0 %v881
        %1003 = vmatpush1.bf16.msra.mxu0 %v880
        %1004 = vmatprep.subr.bf16.mxu0 %v885
        %1005 = vmatpush1.bf16.msra.mxu0 %v884
        %1006 = vmatprep.subr.bf16.mxu0 %v889
        %1007 = vmatpush1.bf16.msra.mxu0 %v888
        %1008 = vmatprep.subr.bf16.mxu0 %v893
        %1009 = vmatpush1.bf16.msra.mxu0 %v892
        %1010 = vmatprep.subr.bf16.mxu0 %v897
        %1011 = vmatpush1.bf16.msra.mxu0 %v896
        %1012 = vmatprep.subr.bf16.mxu0 %v901
        %1013 = vmatpush1.bf16.msra.mxu0 %v900
        %1014 = vmatprep.subr.bf16.mxu0 %v905
        %1015 = vmatpush1.bf16.msra.mxu0 %v904
        %1016 = vmatprep.subr.bf16.mxu0 %v909
        %1017 = vmatpush1.bf16.msra.mxu0 %v908
        %1018 = vmatprep.subr.bf16.mxu0 %v913
        %1019 = vmatpush1.bf16.msra.mxu0 %v912
        %1020 = vmatprep.subr.bf16.mxu0 %v917
        %1021 = vmatpush1.bf16.msra.mxu0 %v916
        %1022 = vmatprep.subr.bf16.mxu0 %v921
        %1023 = vmatpush1.bf16.msra.mxu0 %v920
        %1024 = vmatprep.subr.bf16.mxu0 %v925
        %1025 = vmatpush1.bf16.msra.mxu0 %v924
        %1026 = vmatprep.subr.bf16.mxu0 %v929
        %1027 = vmatpush1.bf16.msra.mxu0 %v928
        %1028 = vmatprep.mubr.bf16.mxu0 %v675
        %1029 = vmatmul.mubr.bf16.gmra.mrb[0].mxu0 %v674
        %v1030 = vpop.f32.mrb[0].mxu0
        %v1031 = vadd.f32 %v382, %v1030
        %v1032 = vpop.f32.mrb[0].mxu0
        %v1033 = vadd.f32 %v386, %v1032
        %v1034 = vpop.f32.mrb[0].mxu0
        %v1035 = vpop.f32.mrb[0].mxu0
        %1036 = vdwg.mxu0
        %1037 = vmatprep.subr.bf16.mxu0 %v871
        %1038 = vmatpush1.bf16.msra.mxu0 %v870
        %1039 = vmatprep.subr.bf16.mxu0 %v875
        %1040 = vmatpush1.bf16.msra.mxu0 %v874
        %1041 = vmatprep.subr.bf16.mxu0 %v879
        %1042 = vmatpush1.bf16.msra.mxu0 %v878
        %1043 = vmatprep.subr.bf16.mxu0 %v883
        %1044 = vmatpush1.bf16.msra.mxu0 %v882
        %1045 = vmatprep.subr.bf16.mxu0 %v887
        %1046 = vmatpush1.bf16.msra.mxu0 %v886
        %1047 = vmatprep.subr.bf16.mxu0 %v891
        %1048 = vmatpush1.bf16.msra.mxu0 %v890
        %1049 = vmatprep.subr.bf16.mxu0 %v895
        %1050 = vmatpush1.bf16.msra.mxu0 %v894
        %1051 = vmatprep.subr.bf16.mxu0 %v899
        %1052 = vmatpush1.bf16.msra.mxu0 %v898
        %1053 = vmatprep.subr.bf16.mxu0 %v903
        %1054 = vmatpush1.bf16.msra.mxu0 %v902
        %1055 = vmatprep.subr.bf16.mxu0 %v907
        %1056 = vmatpush1.bf16.msra.mxu0 %v906
        %1057 = vmatprep.subr.bf16.mxu0 %v911
        %1058 = vmatpush1.bf16.msra.mxu0 %v910
        %1059 = vmatprep.subr.bf16.mxu0 %v915
        %1060 = vmatpush1.bf16.msra.mxu0 %v914
        %1061 = vmatprep.subr.bf16.mxu0 %v919
        %1062 = vmatpush1.bf16.msra.mxu0 %v918
        %1063 = vmatprep.subr.bf16.mxu0 %v923
        %1064 = vmatpush1.bf16.msra.mxu0 %v922
        %1065 = vmatprep.subr.bf16.mxu0 %v927
        %1066 = vmatpush1.bf16.msra.mxu0 %v926
        %1067 = vmatprep.subr.bf16.mxu0 %v931
        %1068 = vmatpush1.bf16.msra.mxu0 %v930
        %1069 = vmatprep.mubr.bf16.mxu0 %v675
        %1070 = vmatmul.mubr.bf16.gmra.mrb[0].mxu0 %v674
        %v1071 = vpop.f32.mrb[0].mxu0
        %v1072 = vadd.f32 %v390, %v1071
        %v1073 = vpop.f32.mrb[0].mxu0
        %v1074 = vadd.f32 %v394, %v1073
        %v1075 = vpop.f32.mrb[0].mxu0
        %v1076 = vpop.f32.mrb[0].mxu0
        %1077 = vdwg.mxu0
        %s1078 = scalar_lea.vmem [#allocation3], 8
        %v1079 = vld [vmem:[%s1078] sm:$0xff]
        %v1080 = vmul.f32 %v1031, 0.5
        %v1081 = vmul.f32 %v1033, 0.5
        %v1082 = vmul.f32 %v1072, 0.5
        %v1083 = vtanh.pop %v1080
        %v1084 = vtanh.pop %v1081
        %v1085 = vtanh.pop %v1082
        %v1086 = vadd.f32 %v1083, 1.0
        %v1087 = vadd.f32 %v1084, 1.0
        %v1088 = vadd.f32 %v1085, 1.0
        %v1089 = vmul.f32 %v1086, 0.5
        %v1090 = vmul.f32 %v1087, 0.5
        %v1091 = vmul.f32 %v1088, 0.5
        %v1092 = vtanh.pop %v1074
        %v1093 = vmul.f32 %v1090, %v1079
        %v1094 = vmul.f32 %v1089, %v1092
        %v1095 = vadd.f32 %v1093, %v1094
        %v1096 = vtanh.pop %v1095
        %v1097 = vmul.f32 %v1091, %v1096
        %1098 = vst [vmem:[%s672] sm:$0xff] %v1097
        %1099 = vst [vmem:[%s1078] sm:$0xff] %v1095
        %s1100 = scalar_lea.vmem %s270, 32
        %v1101 = vld [vmem:[%s1100] sm:$0xff]
        %v1102 = vld [vmem:[%s1100 + $0x8] sm:$0xff]
        %v1103 = vld [vmem:[%s1100 + $0x10] sm:$0xff]
        %v1104 = vld [vmem:[%s1100 + $0x18] sm:$0xff]
        %v1105 = vld [vmem:[#allocation2] sm:$0xff]
        %v1106 = vpack.c.bf16 %v1105, %v1105
        %1107 = vmatprep.subr.bf16.mxu0 %v502
        %1108 = vmatpush1.bf16.msra.mxu0 %v501
        %1109 = vmatprep.subr.bf16.mxu0 %v506
        %1110 = vmatpush1.bf16.msra.mxu0 %v505
        %1111 = vmatprep.subr.bf16.mxu0 %v510
        %1112 = vmatpush1.bf16.msra.mxu0 %v509
        %1113 = vmatprep.subr.bf16.mxu0 %v514
        %1114 = vmatpush1.bf16.msra.mxu0 %v513
        %1115 = vmatprep.subr.bf16.mxu0 %v518
        %1116 = vmatpush1.bf16.msra.mxu0 %v517
        %1117 = vmatprep.subr.bf16.mxu0 %v522
        %1118 = vmatpush1.bf16.msra.mxu0 %v521
        %1119 = vmatprep.subr.bf16.mxu0 %v526
        %1120 = vmatpush1.bf16.msra.mxu0 %v525
        %1121 = vmatprep.subr.bf16.mxu0 %v530
        %1122 = vmatpush1.bf16.msra.mxu0 %v529
        %1123 = vmatprep.subr.bf16.mxu0 0
        %1124 = vmatpush1.bf16.msra.mxu0 0
        %1125 = vmatprep.subr.bf16.mxu0 0
        %1126 = vmatpush1.bf16.msra.mxu0 0
        %1127 = vmatprep.subr.bf16.mxu0 0
        %1128 = vmatpush1.bf16.msra.mxu0 0
        %1129 = vmatprep.subr.bf16.mxu0 0
        %1130 = vmatpush1.bf16.msra.mxu0 0
        %1131 = vmatprep.subr.bf16.mxu0 0
        %1132 = vmatpush1.bf16.msra.mxu0 0
        %1133 = vmatprep.subr.bf16.mxu0 0
        %1134 = vmatpush1.bf16.msra.mxu0 0
        %1135 = vmatprep.subr.bf16.mxu0 0
        %1136 = vmatpush1.bf16.msra.mxu0 0
        %1137 = vmatprep.subr.bf16.mxu0 0
        %1138 = vmatpush1.bf16.msra.mxu0 0
        %1139 = vmatprep.mubr.bf16.mxu0 0
        %1140 = vmatmul.mubr.bf16.gmra.mrb[0].mxu0 %v1106
        %v1141 = vpop.f32.mrb[0].mxu0
        %v1142 = vadd.f32 0.0, %v1141
        %v1143 = vpop.f32.mrb[0].mxu0
        %v1144 = vadd.f32 0.0, %v1143
        %v1145 = vpop.f32.mrb[0].mxu0
        %v1146 = vpop.f32.mrb[0].mxu0
        %1147 = vdwg.mxu0
        %1148 = vmatprep.subr.bf16.mxu0 %v504
        %1149 = vmatpush1.bf16.msra.mxu0 %v503
        %1150 = vmatprep.subr.bf16.mxu0 %v508
        %1151 = vmatpush1.bf16.msra.mxu0 %v507
        %1152 = vmatprep.subr.bf16.mxu0 %v512
        %1153 = vmatpush1.bf16.msra.mxu0 %v511
        %1154 = vmatprep.subr.bf16.mxu0 %v516
        %1155 = vmatpush1.bf16.msra.mxu0 %v515
        %1156 = vmatprep.subr.bf16.mxu0 %v520
        %1157 = vmatpush1.bf16.msra.mxu0 %v519
        %1158 = vmatprep.subr.bf16.mxu0 %v524
        %1159 = vmatpush1.bf16.msra.mxu0 %v523
        %1160 = vmatprep.subr.bf16.mxu0 %v528
        %1161 = vmatpush1.bf16.msra.mxu0 %v527
        %1162 = vmatprep.subr.bf16.mxu0 %v532
        %1163 = vmatpush1.bf16.msra.mxu0 %v531
        %1164 = vmatprep.subr.bf16.mxu0 0
        %1165 = vmatpush1.bf16.msra.mxu0 0
        %1166 = vmatprep.subr.bf16.mxu0 0
        %1167 = vmatpush1.bf16.msra.mxu0 0
        %1168 = vmatprep.subr.bf16.mxu0 0
        %1169 = vmatpush1.bf16.msra.mxu0 0
        %1170 = vmatprep.subr.bf16.mxu0 0
        %1171 = vmatpush1.bf16.msra.mxu0 0
        %1172 = vmatprep.subr.bf16.mxu0 0
        %1173 = vmatpush1.bf16.msra.mxu0 0
        %1174 = vmatprep.subr.bf16.mxu0 0
        %1175 = vmatpush1.bf16.msra.mxu0 0
        %1176 = vmatprep.subr.bf16.mxu0 0
        %1177 = vmatpush1.bf16.msra.mxu0 0
        %1178 = vmatprep.subr.bf16.mxu0 0
        %1179 = vmatpush1.bf16.msra.mxu0 0
        %1180 = vmatprep.mubr.bf16.mxu0 0
        %1181 = vmatmul.mubr.bf16.gmra.mrb[0].mxu0 %v1106
        %v1182 = vpop.f32.mrb[0].mxu0
        %v1183 = vadd.f32 0.0, %v1182
        %v1184 = vpop.f32.mrb[0].mxu0
        %v1185 = vadd.f32 0.0, %v1184
        %v1186 = vpop.f32.mrb[0].mxu0
        %v1187 = vpop.f32.mrb[0].mxu0
        %1188 = vdwg.mxu0
        %v1189 = vadd.f32 %v1101, %v1142
        %v1190 = vadd.f32 %v1102, %v1144
        %v1191 = vadd.f32 %v1103, %v1183
        %v1192 = vadd.f32 %v1104, %v1185
        %v1193 = vld [vmem:[#allocation3] sm:$0xff]
        %v1194 = vmul.f32 %v1189, 0.5
        %v1195 = vmul.f32 %v1190, 0.5
        %v1196 = vmul.f32 %v1191, 0.5
        %v1197 = vtanh.pop %v1194
        %v1198 = vtanh.pop %v1195
        %v1199 = vtanh.pop %v1196
        %v1200 = vadd.f32 %v1197, 1.0
        %v1201 = vadd.f32 %v1198, 1.0
        %v1202 = vadd.f32 %v1199, 1.0
        %v1203 = vmul.f32 %v1200, 0.5
        %v1204 = vmul.f32 %v1201, 0.5
        %v1205 = vmul.f32 %v1202, 0.5
        %v1206 = vtanh.pop %v1192
        %v1207 = vmul.f32 %v1204, %v1193
        %v1208 = vmul.f32 %v1203, %v1206
        %v1209 = vadd.f32 %v1207, %v1208
        %v1210 = vtanh.pop %v1209
        %v1211 = vmul.f32 %v1205, %v1210
        %1212 = vst [vmem:[#allocation2] sm:$0xff] %v1211
        %1213 = vst [vmem:[#allocation3] sm:$0xff] %v1209
        %v1214 = vld [vmem:[%s672] sm:$0xff]
        %v1215 = vpack.c.bf16 %v1211, %v1211
        %v1216 = vpack.c.bf16 %v1214, %v1214
        %1217 = vmatprep.subr.bf16.mxu0 %v869
        %1218 = vmatpush1.bf16.msra.mxu0 %v868
        %1219 = vmatprep.subr.bf16.mxu0 %v873
        %1220 = vmatpush1.bf16.msra.mxu0 %v872
        %1221 = vmatprep.subr.bf16.mxu0 %v877
        %1222 = vmatpush1.bf16.msra.mxu0 %v876
        %1223 = vmatprep.subr.bf16.mxu0 %v881
        %1224 = vmatpush1.bf16.msra.mxu0 %v880
        %1225 = vmatprep.subr.bf16.mxu0 %v885
        %1226 = vmatpush1.bf16.msra.mxu0 %v884
        %1227 = vmatprep.subr.bf16.mxu0 %v889
        %1228 = vmatpush1.bf16.msra.mxu0 %v888
        %1229 = vmatprep.subr.bf16.mxu0 %v893
        %1230 = vmatpush1.bf16.msra.mxu0 %v892
        %1231 = vmatprep.subr.bf16.mxu0 %v897
        %1232 = vmatpush1.bf16.msra.mxu0 %v896
        %1233 = vmatprep.subr.bf16.mxu0 %v901
        %1234 = vmatpush1.bf16.msra.mxu0 %v900
        %1235 = vmatprep.subr.bf16.mxu0 %v905
        %1236 = vmatpush1.bf16.msra.mxu0 %v904
        %1237 = vmatprep.subr.bf16.mxu0 %v909
        %1238 = vmatpush1.bf16.msra.mxu0 %v908
        %1239 = vmatprep.subr.bf16.mxu0 %v913
        %1240 = vmatpush1.bf16.msra.mxu0 %v912
        %1241 = vmatprep.subr.bf16.mxu0 %v917
        %1242 = vmatpush1.bf16.msra.mxu0 %v916
        %1243 = vmatprep.subr.bf16.mxu0 %v921
        %1244 = vmatpush1.bf16.msra.mxu0 %v920
        %1245 = vmatprep.subr.bf16.mxu0 %v925
        %1246 = vmatpush1.bf16.msra.mxu0 %v924
        %1247 = vmatprep.subr.bf16.mxu0 %v929
        %1248 = vmatpush1.bf16.msra.mxu0 %v928
        %1249 = vmatprep.mubr.bf16.mxu0 %v1216
        %1250 = vmatmul.mubr.bf16.gmra.mrb[0].mxu0 %v1215
        %v1251 = vpop.f32.mrb[0].mxu0
        %v1252 = vadd.f32 %v382, %v1251
        %v1253 = vpop.f32.mrb[0].mxu0
        %v1254 = vadd.f32 %v386, %v1253
        %v1255 = vpop.f32.mrb[0].mxu0
        %v1256 = vpop.f32.mrb[0].mxu0
        %1257 = vdwg.mxu0
        %1258 = vmatprep.subr.bf16.mxu0 %v871
        %1259 = vmatpush1.bf16.msra.mxu0 %v870
        %1260 = vmatprep.subr.bf16.mxu0 %v875
        %1261 = vmatpush1.bf16.msra.mxu0 %v874
        %1262 = vmatprep.subr.bf16.mxu0 %v879
        %1263 = vmatpush1.bf16.msra.mxu0 %v878
        %1264 = vmatprep.subr.bf16.mxu0 %v883
        %1265 = vmatpush1.bf16.msra.mxu0 %v882
        %1266 = vmatprep.subr.bf16.mxu0 %v887
        %1267 = vmatpush1.bf16.msra.mxu0 %v886
        %1268 = vmatprep.subr.bf16.mxu0 %v891
        %1269 = vmatpush1.bf16.msra.mxu0 %v890
        %1270 = vmatprep.subr.bf16.mxu0 %v895
        %1271 = vmatpush1.bf16.msra.mxu0 %v894
        %1272 = vmatprep.subr.bf16.mxu0 %v899
        %1273 = vmatpush1.bf16.msra.mxu0 %v898
        %1274 = vmatprep.subr.bf16.mxu0 %v903
        %1275 = vmatpush1.bf16.msra.mxu0 %v902
        %1276 = vmatprep.subr.bf16.mxu0 %v907
        %1277 = vmatpush1.bf16.msra.mxu0 %v906
        %1278 = vmatprep.subr.bf16.mxu0 %v911
        %1279 = vmatpush1.bf16.msra.mxu0 %v910
        %1280 = vmatprep.subr.bf16.mxu0 %v915
        %1281 = vmatpush1.bf16.msra.mxu0 %v914
        %1282 = vmatprep.subr.bf16.mxu0 %v919
        %1283 = vmatpush1.bf16.msra.mxu0 %v918
        %1284 = vmatprep.subr.bf16.mxu0 %v923
        %1285 = vmatpush1.bf16.msra.mxu0 %v922
        %1286 = vmatprep.subr.bf16.mxu0 %v927
        %1287 = vmatpush1.bf16.msra.mxu0 %v926
        %1288 = vmatprep.subr.bf16.mxu0 %v931
        %1289 = vmatpush1.bf16.msra.mxu0 %v930
        %1290 = vmatprep.mubr.bf16.mxu0 %v1216
        %1291 = vmatmul.mubr.bf16.gmra.mrb[0].mxu0 %v1215
        %v1292 = vpop.f32.mrb[0].mxu0
        %v1293 = vadd.f32 %v390, %v1292
        %v1294 = vpop.f32.mrb[0].mxu0
        %v1295 = vadd.f32 %v394, %v1294
        %v1296 = vpop.f32.mrb[0].mxu0
        %v1297 = vpop.f32.mrb[0].mxu0
        %1298 = vdwg.mxu0
        %v1299 = vld [vmem:[%s1078] sm:$0xff]
        %v1300 = vmul.f32 %v1252, 0.5
        %v1301 = vmul.f32 %v1254, 0.5
        %v1302 = vmul.f32 %v1293, 0.5
        %v1303 = vtanh.pop %v1300
        %v1304 = vtanh.pop %v1301
        %v1305 = vtanh.pop %v1302
        %v1306 = vadd.f32 %v1303, 1.0
        %v1307 = vadd.f32 %v1304, 1.0
        %v1308 = vadd.f32 %v1305, 1.0
        %v1309 = vmul.f32 %v1306, 0.5
        %v1310 = vmul.f32 %v1307, 0.5
        %v1311 = vmul.f32 %v1308, 0.5
        %v1312 = vtanh.pop %v1295
        %v1313 = vmul.f32 %v1310, %v1299
        %v1314 = vmul.f32 %v1309, %v1312
        %v1315 = vadd.f32 %v1313, %v1314
        %v1316 = vtanh.pop %v1315
        %v1317 = vmul.f32 %v1311, %v1316
        %1318 = vst [vmem:[%s672] sm:$0xff] %v1317
        %1319 = vst [vmem:[%s1078] sm:$0xff] %v1315
        %s1320 = scalar_lea.vmem %s270, 64
        %v1321 = vld [vmem:[%s1320] sm:$0xff]
        %v1322 = vld [vmem:[%s1320 + $0x8] sm:$0xff]
        %v1323 = vld [vmem:[%s1320 + $0x10] sm:$0xff]
        %v1324 = vld [vmem:[%s1320 + $0x18] sm:$0xff]
        %v1325 = vld [vmem:[#allocation2] sm:$0xff]
        %v1326 = vpack.c.bf16 %v1325, %v1325
        %1327 = vmatprep.subr.bf16.mxu0 %v502
        %1328 = vmatpush1.bf16.msra.mxu0 %v501
        %1329 = vmatprep.subr.bf16.mxu0 %v506
        %1330 = vmatpush1.bf16.msra.mxu0 %v505
        %1331 = vmatprep.subr.bf16.mxu0 %v510
        %1332 = vmatpush1.bf16.msra.mxu0 %v509
        %1333 = vmatprep.subr.bf16.mxu0 %v514
        %1334 = vmatpush1.bf16.msra.mxu0 %v513
        %1335 = vmatprep.subr.bf16.mxu0 %v518
        %1336 = vmatpush1.bf16.msra.mxu0 %v517
        %1337 = vmatprep.subr.bf16.mxu0 %v522
        %1338 = vmatpush1.bf16.msra.mxu0 %v521
        %1339 = vmatprep.subr.bf16.mxu0 %v526
        %1340 = vmatpush1.bf16.msra.mxu0 %v525
        %1341 = vmatprep.subr.bf16.mxu0 %v530
        %1342 = vmatpush1.bf16.msra.mxu0 %v529
        %1343 = vmatprep.subr.bf16.mxu0 0
        %1344 = vmatpush1.bf16.msra.mxu0 0
        %1345 = vmatprep.subr.bf16.mxu0 0
        %1346 = vmatpush1.bf16.msra.mxu0 0
        %1347 = vmatprep.subr.bf16.mxu0 0
        %1348 = vmatpush1.bf16.msra.mxu0 0
        %1349 = vmatprep.subr.bf16.mxu0 0
        %1350 = vmatpush1.bf16.msra.mxu0 0
        %1351 = vmatprep.subr.bf16.mxu0 0
        %1352 = vmatpush1.bf16.msra.mxu0 0
        %1353 = vmatprep.subr.bf16.mxu0 0
        %1354 = vmatpush1.bf16.msra.mxu0 0
        %1355 = vmatprep.subr.bf16.mxu0 0
        %1356 = vmatpush1.bf16.msra.mxu0 0
        %1357 = vmatprep.subr.bf16.mxu0 0
        %1358 = vmatpush1.bf16.msra.mxu0 0
        %1359 = vmatprep.mubr.bf16.mxu0 0
        %1360 = vmatmul.mubr.bf16.gmra.mrb[0].mxu0 %v1326
        %v1361 = vpop.f32.mrb[0].mxu0
        %v1362 = vadd.f32 0.0, %v1361
        %v1363 = vpop.f32.mrb[0].mxu0
        %v1364 = vadd.f32 0.0, %v1363
        %v1365 = vpop.f32.mrb[0].mxu0
        %v1366 = vpop.f32.mrb[0].mxu0
        %1367 = vdwg.mxu0
        %1368 = vmatprep.subr.bf16.mxu0 %v504
        %1369 = vmatpush1.bf16.msra.mxu0 %v503
        %1370 = vmatprep.subr.bf16.mxu0 %v508
        %1371 = vmatpush1.bf16.msra.mxu0 %v507
        %1372 = vmatprep.subr.bf16.mxu0 %v512
        %1373 = vmatpush1.bf16.msra.mxu0 %v511
        %1374 = vmatprep.subr.bf16.mxu0 %v516
        %1375 = vmatpush1.bf16.msra.mxu0 %v515
        %1376 = vmatprep.subr.bf16.mxu0 %v520
        %1377 = vmatpush1.bf16.msra.mxu0 %v519
        %1378 = vmatprep.subr.bf16.mxu0 %v524
        %1379 = vmatpush1.bf16.msra.mxu0 %v523
        %1380 = vmatprep.subr.bf16.mxu0 %v528
        %1381 = vmatpush1.bf16.msra.mxu0 %v527
        %1382 = vmatprep.subr.bf16.mxu0 %v532
        %1383 = vmatpush1.bf16.msra.mxu0 %v531
        %1384 = vmatprep.subr.bf16.mxu0 0
        %1385 = vmatpush1.bf16.msra.mxu0 0
        %1386 = vmatprep.subr.bf16.mxu0 0
        %1387 = vmatpush1.bf16.msra.mxu0 0
        %1388 = vmatprep.subr.bf16.mxu0 0
        %1389 = vmatpush1.bf16.msra.mxu0 0
        %1390 = vmatprep.subr.bf16.mxu0 0
        %1391 = vmatpush1.bf16.msra.mxu0 0
        %1392 = vmatprep.subr.bf16.mxu0 0
        %1393 = vmatpush1.bf16.msra.mxu0 0
        %1394 = vmatprep.subr.bf16.mxu0 0
        %1395 = vmatpush1.bf16.msra.mxu0 0
        %1396 = vmatprep.subr.bf16.mxu0 0
        %1397 = vmatpush1.bf16.msra.mxu0 0
        %1398 = vmatprep.subr.bf16.mxu0 0
        %1399 = vmatpush1.bf16.msra.mxu0 0
        %1400 = vmatprep.mubr.bf16.mxu0 0
        %1401 = vmatmul.mubr.bf16.gmra.mrb[0].mxu0 %v1326
        %v1402 = vpop.f32.mrb[0].mxu0
        %v1403 = vadd.f32 0.0, %v1402
        %v1404 = vpop.f32.mrb[0].mxu0
        %v1405 = vadd.f32 0.0, %v1404
        %v1406 = vpop.f32.mrb[0].mxu0
        %v1407 = vpop.f32.mrb[0].mxu0
        %1408 = vdwg.mxu0
        %v1409 = vadd.f32 %v1321, %v1362
        %v1410 = vadd.f32 %v1322, %v1364
        %v1411 = vadd.f32 %v1323, %v1403
        %v1412 = vadd.f32 %v1324, %v1405
        %v1413 = vld [vmem:[#allocation3] sm:$0xff]
        %v1414 = vmul.f32 %v1409, 0.5
        %v1415 = vmul.f32 %v1410, 0.5
        %v1416 = vmul.f32 %v1411, 0.5
        %v1417 = vtanh.pop %v1414
        %v1418 = vtanh.pop %v1415
        %v1419 = vtanh.pop %v1416
        %v1420 = vadd.f32 %v1417, 1.0
        %v1421 = vadd.f32 %v1418, 1.0
        %v1422 = vadd.f32 %v1419, 1.0
        %v1423 = vmul.f32 %v1420, 0.5
        %v1424 = vmul.f32 %v1421, 0.5
        %v1425 = vmul.f32 %v1422, 0.5
        %v1426 = vtanh.pop %v1412
        %v1427 = vmul.f32 %v1424, %v1413
        %v1428 = vmul.f32 %v1423, %v1426
        %v1429 = vadd.f32 %v1427, %v1428
        %v1430 = vtanh.pop %v1429
        %v1431 = vmul.f32 %v1425, %v1430
        %1432 = vst [vmem:[#allocation2] sm:$0xff] %v1431
        %1433 = vst [vmem:[#allocation3] sm:$0xff] %v1429
        %v1434 = vld [vmem:[%s672] sm:$0xff]
        %v1435 = vpack.c.bf16 %v1431, %v1431
        %v1436 = vpack.c.bf16 %v1434, %v1434
        %1437 = vmatprep.subr.bf16.mxu0 %v869
        %1438 = vmatpush1.bf16.msra.mxu0 %v868
        %1439 = vmatprep.subr.bf16.mxu0 %v873
        %1440 = vmatpush1.bf16.msra.mxu0 %v872
        %1441 = vmatprep.subr.bf16.mxu0 %v877
        %1442 = vmatpush1.bf16.msra.mxu0 %v876
        %1443 = vmatprep.subr.bf16.mxu0 %v881
        %1444 = vmatpush1.bf16.msra.mxu0 %v880
        %1445 = vmatprep.subr.bf16.mxu0 %v885
        %1446 = vmatpush1.bf16.msra.mxu0 %v884
        %1447 = vmatprep.subr.bf16.mxu0 %v889
        %1448 = vmatpush1.bf16.msra.mxu0 %v888
        %1449 = vmatprep.subr.bf16.mxu0 %v893
        %1450 = vmatpush1.bf16.msra.mxu0 %v892
        %1451 = vmatprep.subr.bf16.mxu0 %v897
        %1452 = vmatpush1.bf16.msra.mxu0 %v896
        %1453 = vmatprep.subr.bf16.mxu0 %v901
        %1454 = vmatpush1.bf16.msra.mxu0 %v900
        %1455 = vmatprep.subr.bf16.mxu0 %v905
        %1456 = vmatpush1.bf16.msra.mxu0 %v904
        %1457 = vmatprep.subr.bf16.mxu0 %v909
        %1458 = vmatpush1.bf16.msra.mxu0 %v908
        %1459 = vmatprep.subr.bf16.mxu0 %v913
        %1460 = vmatpush1.bf16.msra.mxu0 %v912
        %1461 = vmatprep.subr.bf16.mxu0 %v917
        %1462 = vmatpush1.bf16.msra.mxu0 %v916
        %1463 = vmatprep.subr.bf16.mxu0 %v921
        %1464 = vmatpush1.bf16.msra.mxu0 %v920
        %1465 = vmatprep.subr.bf16.mxu0 %v925
        %1466 = vmatpush1.bf16.msra.mxu0 %v924
        %1467 = vmatprep.subr.bf16.mxu0 %v929
        %1468 = vmatpush1.bf16.msra.mxu0 %v928
        %1469 = vmatprep.mubr.bf16.mxu0 %v1436
        %1470 = vmatmul.mubr.bf16.gmra.mrb[0].mxu0 %v1435
        %v1471 = vpop.f32.mrb[0].mxu0
        %v1472 = vadd.f32 %v382, %v1471
        %v1473 = vpop.f32.mrb[0].mxu0
        %v1474 = vadd.f32 %v386, %v1473
        %v1475 = vpop.f32.mrb[0].mxu0
        %v1476 = vpop.f32.mrb[0].mxu0
        %1477 = vdwg.mxu0
        %1478 = vmatprep.subr.bf16.mxu0 %v871
        %1479 = vmatpush1.bf16.msra.mxu0 %v870
        %1480 = vmatprep.subr.bf16.mxu0 %v875
        %1481 = vmatpush1.bf16.msra.mxu0 %v874
        %1482 = vmatprep.subr.bf16.mxu0 %v879
        %1483 = vmatpush1.bf16.msra.mxu0 %v878
        %1484 = vmatprep.subr.bf16.mxu0 %v883
        %1485 = vmatpush1.bf16.msra.mxu0 %v882
        %1486 = vmatprep.subr.bf16.mxu0 %v887
        %1487 = vmatpush1.bf16.msra.mxu0 %v886
        %1488 = vmatprep.subr.bf16.mxu0 %v891
        %1489 = vmatpush1.bf16.msra.mxu0 %v890
        %1490 = vmatprep.subr.bf16.mxu0 %v895
        %1491 = vmatpush1.bf16.msra.mxu0 %v894
        %1492 = vmatprep.subr.bf16.mxu0 %v899
        %1493 = vmatpush1.bf16.msra.mxu0 %v898
        %1494 = vmatprep.subr.bf16.mxu0 %v903
        %1495 = vmatpush1.bf16.msra.mxu0 %v902
        %1496 = vmatprep.subr.bf16.mxu0 %v907
        %1497 = vmatpush1.bf16.msra.mxu0 %v906
        %1498 = vmatprep.subr.bf16.mxu0 %v911
        %1499 = vmatpush1.bf16.msra.mxu0 %v910
        %1500 = vmatprep.subr.bf16.mxu0 %v915
        %1501 = vmatpush1.bf16.msra.mxu0 %v914
        %1502 = vmatprep.subr.bf16.mxu0 %v919
        %1503 = vmatpush1.bf16.msra.mxu0 %v918
        %1504 = vmatprep.subr.bf16.mxu0 %v923
        %1505 = vmatpush1.bf16.msra.mxu0 %v922
        %1506 = vmatprep.subr.bf16.mxu0 %v927
        %1507 = vmatpush1.bf16.msra.mxu0 %v926
        %1508 = vmatprep.subr.bf16.mxu0 %v931
        %1509 = vmatpush1.bf16.msra.mxu0 %v930
        %1510 = vmatprep.mubr.bf16.mxu0 %v1436
        %1511 = vmatmul.mubr.bf16.gmra.mrb[0].mxu0 %v1435
        %v1512 = vpop.f32.mrb[0].mxu0
        %v1513 = vadd.f32 %v390, %v1512
        %v1514 = vpop.f32.mrb[0].mxu0
        %v1515 = vadd.f32 %v394, %v1514
        %v1516 = vpop.f32.mrb[0].mxu0
        %v1517 = vpop.f32.mrb[0].mxu0
        %1518 = vdwg.mxu0
        %v1519 = vld [vmem:[%s1078] sm:$0xff]
        %v1520 = vmul.f32 %v1472, 0.5
        %v1521 = vmul.f32 %v1474, 0.5
        %v1522 = vmul.f32 %v1513, 0.5
        %v1523 = vtanh.pop %v1520
        %v1524 = vtanh.pop %v1521
        %v1525 = vtanh.pop %v1522
        %v1526 = vadd.f32 %v1523, 1.0
        %v1527 = vadd.f32 %v1524, 1.0
        %v1528 = vadd.f32 %v1525, 1.0
        %v1529 = vmul.f32 %v1526, 0.5
        %v1530 = vmul.f32 %v1527, 0.5
        %v1531 = vmul.f32 %v1528, 0.5
        %v1532 = vtanh.pop %v1515
        %v1533 = vmul.f32 %v1530, %v1519
        %v1534 = vmul.f32 %v1529, %v1532
        %v1535 = vadd.f32 %v1533, %v1534
        %v1536 = vtanh.pop %v1535
        %v1537 = vmul.f32 %v1531, %v1536
        %1538 = vst [vmem:[%s672] sm:$0xff] %v1537
        %1539 = vst [vmem:[%s1078] sm:$0xff] %v1535
        %s1540 = scalar_lea.vmem %s270, 96
        %v1541 = vld [vmem:[%s1540] sm:$0xff]
        %v1542 = vld [vmem:[%s1540 + $0x8] sm:$0xff]
        %v1543 = vld [vmem:[%s1540 + $0x10] sm:$0xff]
        %v1544 = vld [vmem:[%s1540 + $0x18] sm:$0xff]
        %v1545 = vld [vmem:[#allocation2] sm:$0xff]
        %v1546 = vpack.c.bf16 %v1545, %v1545
        %1547 = vmatprep.subr.bf16.mxu0 %v502
        %1548 = vmatpush1.bf16.msra.mxu0 %v501
        %1549 = vmatprep.subr.bf16.mxu0 %v506
        %1550 = vmatpush1.bf16.msra.mxu0 %v505
        %1551 = vmatprep.subr.bf16.mxu0 %v510
        %1552 = vmatpush1.bf16.msra.mxu0 %v509
        %1553 = vmatprep.subr.bf16.mxu0 %v514
        %1554 = vmatpush1.bf16.msra.mxu0 %v513
        %1555 = vmatprep.subr.bf16.mxu0 %v518
        %1556 = vmatpush1.bf16.msra.mxu0 %v517
        %1557 = vmatprep.subr.bf16.mxu0 %v522
        %1558 = vmatpush1.bf16.msra.mxu0 %v521
        %1559 = vmatprep.subr.bf16.mxu0 %v526
        %1560 = vmatpush1.bf16.msra.mxu0 %v525
        %1561 = vmatprep.subr.bf16.mxu0 %v530
        %1562 = vmatpush1.bf16.msra.mxu0 %v529
        %1563 = vmatprep.subr.bf16.mxu0 0
        %1564 = vmatpush1.bf16.msra.mxu0 0
        %1565 = vmatprep.subr.bf16.mxu0 0
        %1566 = vmatpush1.bf16.msra.mxu0 0
        %1567 = vmatprep.subr.bf16.mxu0 0
        %1568 = vmatpush1.bf16.msra.mxu0 0
        %1569 = vmatprep.subr.bf16.mxu0 0
        %1570 = vmatpush1.bf16.msra.mxu0 0
        %1571 = vmatprep.subr.bf16.mxu0 0
        %1572 = vmatpush1.bf16.msra.mxu0 0
        %1573 = vmatprep.subr.bf16.mxu0 0
        %1574 = vmatpush1.bf16.msra.mxu0 0
        %1575 = vmatprep.subr.bf16.mxu0 0
        %1576 = vmatpush1.bf16.msra.mxu0 0
        %1577 = vmatprep.subr.bf16.mxu0 0
        %1578 = vmatpush1.bf16.msra.mxu0 0
        %1579 = vmatprep.mubr.bf16.mxu0 0
        %1580 = vmatmul.mubr.bf16.gmra.mrb[0].mxu0 %v1546
        %v1581 = vpop.f32.mrb[0].mxu0
        %v1582 = vadd.f32 0.0, %v1581
        %v1583 = vpop.f32.mrb[0].mxu0
        %v1584 = vadd.f32 0.0, %v1583
        %v1585 = vpop.f32.mrb[0].mxu0
        %v1586 = vpop.f32.mrb[0].mxu0
        %1587 = vdwg.mxu0
        %1588 = vmatprep.subr.bf16.mxu0 %v504
        %1589 = vmatpush1.bf16.msra.mxu0 %v503
        %1590 = vmatprep.subr.bf16.mxu0 %v508
        %1591 = vmatpush1.bf16.msra.mxu0 %v507
        %1592 = vmatprep.subr.bf16.mxu0 %v512
        %1593 = vmatpush1.bf16.msra.mxu0 %v511
        %1594 = vmatprep.subr.bf16.mxu0 %v516
        %1595 = vmatpush1.bf16.msra.mxu0 %v515
        %1596 = vmatprep.subr.bf16.mxu0 %v520
        %1597 = vmatpush1.bf16.msra.mxu0 %v519
        %1598 = vmatprep.subr.bf16.mxu0 %v524
        %1599 = vmatpush1.bf16.msra.mxu0 %v523
        %1600 = vmatprep.subr.bf16.mxu0 %v528
        %1601 = vmatpush1.bf16.msra.mxu0 %v527
        %1602 = vmatprep.subr.bf16.mxu0 %v532
        %1603 = vmatpush1.bf16.msra.mxu0 %v531
        %1604 = vmatprep.subr.bf16.mxu0 0
        %1605 = vmatpush1.bf16.msra.mxu0 0
        %1606 = vmatprep.subr.bf16.mxu0 0
        %1607 = vmatpush1.bf16.msra.mxu0 0
        %1608 = vmatprep.subr.bf16.mxu0 0
        %1609 = vmatpush1.bf16.msra.mxu0 0
        %1610 = vmatprep.subr.bf16.mxu0 0
        %1611 = vmatpush1.bf16.msra.mxu0 0
        %1612 = vmatprep.subr.bf16.mxu0 0
        %1613 = vmatpush1.bf16.msra.mxu0 0
        %1614 = vmatprep.subr.bf16.mxu0 0
        %1615 = vmatpush1.bf16.msra.mxu0 0
        %1616 = vmatprep.subr.bf16.mxu0 0
        %1617 = vmatpush1.bf16.msra.mxu0 0
        %1618 = vmatprep.subr.bf16.mxu0 0
        %1619 = vmatpush1.bf16.msra.mxu0 0
        %1620 = vmatprep.mubr.bf16.mxu0 0
        %1621 = vmatmul.mubr.bf16.gmra.mrb[0].mxu0 %v1546
        %v1622 = vpop.f32.mrb[0].mxu0
        %v1623 = vadd.f32 0.0, %v1622
        %v1624 = vpop.f32.mrb[0].mxu0
        %v1625 = vadd.f32 0.0, %v1624
        %v1626 = vpop.f32.mrb[0].mxu0
        %v1627 = vpop.f32.mrb[0].mxu0
        %1628 = vdwg.mxu0
        %v1629 = vadd.f32 %v1541, %v1582
        %v1630 = vadd.f32 %v1542, %v1584
        %v1631 = vadd.f32 %v1543, %v1623
        %v1632 = vadd.f32 %v1544, %v1625
        %v1633 = vld [vmem:[#allocation3] sm:$0xff]
        %v1634 = vmul.f32 %v1629, 0.5
        %v1635 = vmul.f32 %v1630, 0.5
        %v1636 = vmul.f32 %v1631, 0.5
        %v1637 = vtanh.pop %v1634
        %v1638 = vtanh.pop %v1635
        %v1639 = vtanh.pop %v1636
        %v1640 = vadd.f32 %v1637, 1.0
        %v1641 = vadd.f32 %v1638, 1.0
        %v1642 = vadd.f32 %v1639, 1.0
        %v1643 = vmul.f32 %v1640, 0.5
        %v1644 = vmul.f32 %v1641, 0.5
        %v1645 = vmul.f32 %v1642, 0.5
        %v1646 = vtanh.pop %v1632
        %v1647 = vmul.f32 %v1644, %v1633
        %v1648 = vmul.f32 %v1643, %v1646
        %v1649 = vadd.f32 %v1647, %v1648
        %v1650 = vtanh.pop %v1649
        %v1651 = vmul.f32 %v1645, %v1650
        %1652 = vst [vmem:[#allocation2] sm:$0xff] %v1651
        %1653 = vst [vmem:[#allocation3] sm:$0xff] %v1649
        %v1654 = vld [vmem:[%s672] sm:$0xff]
        %v1655 = vpack.c.bf16 %v1651, %v1651
        %v1656 = vpack.c.bf16 %v1654, %v1654
        %1657 = vmatprep.subr.bf16.mxu0 %v869
        %1658 = vmatpush1.bf16.msra.mxu0 %v868
        %1659 = vmatprep.subr.bf16.mxu0 %v873
        %1660 = vmatpush1.bf16.msra.mxu0 %v872
        %1661 = vmatprep.subr.bf16.mxu0 %v877
        %1662 = vmatpush1.bf16.msra.mxu0 %v876
        %1663 = vmatprep.subr.bf16.mxu0 %v881
        %1664 = vmatpush1.bf16.msra.mxu0 %v880
        %1665 = vmatprep.subr.bf16.mxu0 %v885
        %1666 = vmatpush1.bf16.msra.mxu0 %v884
        %1667 = vmatprep.subr.bf16.mxu0 %v889
        %1668 = vmatpush1.bf16.msra.mxu0 %v888
        %1669 = vmatprep.subr.bf16.mxu0 %v893
        %1670 = vmatpush1.bf16.msra.mxu0 %v892
        %1671 = vmatprep.subr.bf16.mxu0 %v897
        %1672 = vmatpush1.bf16.msra.mxu0 %v896
        %1673 = vmatprep.subr.bf16.mxu0 %v901
        %1674 = vmatpush1.bf16.msra.mxu0 %v900
        %1675 = vmatprep.subr.bf16.mxu0 %v905
        %1676 = vmatpush1.bf16.msra.mxu0 %v904
        %1677 = vmatprep.subr.bf16.mxu0 %v909
        %1678 = vmatpush1.bf16.msra.mxu0 %v908
        %1679 = vmatprep.subr.bf16.mxu0 %v913
        %1680 = vmatpush1.bf16.msra.mxu0 %v912
        %1681 = vmatprep.subr.bf16.mxu0 %v917
        %1682 = vmatpush1.bf16.msra.mxu0 %v916
        %1683 = vmatprep.subr.bf16.mxu0 %v921
        %1684 = vmatpush1.bf16.msra.mxu0 %v920
        %1685 = vmatprep.subr.bf16.mxu0 %v925
        %1686 = vmatpush1.bf16.msra.mxu0 %v924
        %1687 = vmatprep.subr.bf16.mxu0 %v929
        %1688 = vmatpush1.bf16.msra.mxu0 %v928
        %1689 = vmatprep.mubr.bf16.mxu0 %v1656
        %1690 = vmatmul.mubr.bf16.gmra.mrb[0].mxu0 %v1655
        %v1691 = vpop.f32.mrb[0].mxu0
        %v1692 = vadd.f32 %v382, %v1691
        %v1693 = vpop.f32.mrb[0].mxu0
        %v1694 = vadd.f32 %v386, %v1693
        %v1695 = vpop.f32.mrb[0].mxu0
        %v1696 = vpop.f32.mrb[0].mxu0
        %1697 = vdwg.mxu0
        %1698 = vmatprep.subr.bf16.mxu0 %v871
        %1699 = vmatpush1.bf16.msra.mxu0 %v870
        %1700 = vmatprep.subr.bf16.mxu0 %v875
        %1701 = vmatpush1.bf16.msra.mxu0 %v874
        %1702 = vmatprep.subr.bf16.mxu0 %v879
        %1703 = vmatpush1.bf16.msra.mxu0 %v878
        %1704 = vmatprep.subr.bf16.mxu0 %v883
        %1705 = vmatpush1.bf16.msra.mxu0 %v882
        %1706 = vmatprep.subr.bf16.mxu0 %v887
        %1707 = vmatpush1.bf16.msra.mxu0 %v886
        %1708 = vmatprep.subr.bf16.mxu0 %v891
        %1709 = vmatpush1.bf16.msra.mxu0 %v890
        %1710 = vmatprep.subr.bf16.mxu0 %v895
        %1711 = vmatpush1.bf16.msra.mxu0 %v894
        %1712 = vmatprep.subr.bf16.mxu0 %v899
        %1713 = vmatpush1.bf16.msra.mxu0 %v898
        %1714 = vmatprep.subr.bf16.mxu0 %v903
        %1715 = vmatpush1.bf16.msra.mxu0 %v902
        %1716 = vmatprep.subr.bf16.mxu0 %v907
        %1717 = vmatpush1.bf16.msra.mxu0 %v906
        %1718 = vmatprep.subr.bf16.mxu0 %v911
        %1719 = vmatpush1.bf16.msra.mxu0 %v910
        %1720 = vmatprep.subr.bf16.mxu0 %v915
        %1721 = vmatpush1.bf16.msra.mxu0 %v914
        %1722 = vmatprep.subr.bf16.mxu0 %v919
        %1723 = vmatpush1.bf16.msra.mxu0 %v918
        %1724 = vmatprep.subr.bf16.mxu0 %v923
        %1725 = vmatpush1.bf16.msra.mxu0 %v922
        %1726 = vmatprep.subr.bf16.mxu0 %v927
        %1727 = vmatpush1.bf16.msra.mxu0 %v926
        %1728 = vmatprep.subr.bf16.mxu0 %v931
        %1729 = vmatpush1.bf16.msra.mxu0 %v930
        %1730 = vmatprep.mubr.bf16.mxu0 %v1656
        %1731 = vmatmul.mubr.bf16.gmra.mrb[0].mxu0 %v1655
        %v1732 = vpop.f32.mrb[0].mxu0
        %v1733 = vadd.f32 %v390, %v1732
        %v1734 = vpop.f32.mrb[0].mxu0
        %v1735 = vadd.f32 %v394, %v1734
        %v1736 = vpop.f32.mrb[0].mxu0
        %v1737 = vpop.f32.mrb[0].mxu0
        %1738 = vdwg.mxu0
        %v1739 = vld [vmem:[%s1078] sm:$0xff]
        %v1740 = vmul.f32 %v1692, 0.5
        %v1741 = vmul.f32 %v1694, 0.5
        %v1742 = vmul.f32 %v1733, 0.5
        %v1743 = vtanh.pop %v1740
        %v1744 = vtanh.pop %v1741
        %v1745 = vtanh.pop %v1742
        %v1746 = vadd.f32 %v1743, 1.0
        %v1747 = vadd.f32 %v1744, 1.0
        %v1748 = vadd.f32 %v1745, 1.0
        %v1749 = vmul.f32 %v1746, 0.5
        %v1750 = vmul.f32 %v1747, 0.5
        %v1751 = vmul.f32 %v1748, 0.5
        %v1752 = vtanh.pop %v1735
        %v1753 = vmul.f32 %v1750, %v1739
        %v1754 = vmul.f32 %v1749, %v1752
        %v1755 = vadd.f32 %v1753, %v1754
        %v1756 = vtanh.pop %v1755
        %v1757 = vmul.f32 %v1751, %v1756
        %1758 = vst [vmem:[%s672] sm:$0xff] %v1757
        %1759 = vst [vmem:[%s1078] sm:$0xff] %v1755
        %p1760 = scmp.eq.s32.totalorder %s19, 1
        // Predicated region
        $region57: #{lstm_forward.1} parent=43 // pred_check
          %p1761 = pneg %p1760
        $region58: #{lstm_forward.1} parent=43 // pred_check_branch
          %1763 = sbr.rel (%p1761) target = $region60
        $region59: #{lstm_forward.1} parent=43 // pred_region
          %v1764 = vld [vmem:[%s672] sm:$0xff]
          %v1765 = vpack.c.bf16 %v1764, %v1764
          %v1766 = vld [vmem:[#allocation6] sm:$0xf]
          %v1767 = vld [vmem:[#allocation6 + $0x4] sm:$0xf]
          %v1768 = vld [vmem:[#allocation6 + $0x8] sm:$0xf]
          %v1769 = vld [vmem:[#allocation6 + $0xc] sm:$0xf]
          %v1770 = vld [vmem:[#allocation6 + $0x10] sm:$0xf]
          %v1771 = vld [vmem:[#allocation6 + $0x14] sm:$0xf]
          %v1772 = vld [vmem:[#allocation6 + $0x18] sm:$0xf]
          %v1773 = vld [vmem:[#allocation6 + $0x1c] sm:$0xf]
          %v1774 = vld [vmem:[#allocation6 + $0x20] sm:$0xf]
          %v1775 = vld [vmem:[#allocation6 + $0x24] sm:$0xf]
          %v1776 = vld [vmem:[#allocation6 + $0x28] sm:$0xf]
          %v1777 = vld [vmem:[#allocation6 + $0x2c] sm:$0xf]
          %v1778 = vld [vmem:[#allocation6 + $0x30] sm:$0xf]
          %v1779 = vld [vmem:[#allocation6 + $0x34] sm:$0xf]
          %v1780 = vld [vmem:[#allocation6 + $0x38] sm:$0xf]
          %v1781 = vld [vmem:[#allocation6 + $0x3c] sm:$0xf]
          %v1782 = vld [vmem:[%s5] sm:$0x1]
          %v1784 = vlaneseq
          %v1785 = vshrl.u32 %v1784, 7
          %v1786 = vsub.s32 0, %v1785
          %v1787 = vrot.slane %v1782, %v1786
          %v1805 = vunpack.c.l.b16 %v1766
          %v1806 = vunpack.c.l.b16 %v1767
          %v1807 = vunpack.c.l.b16 %v1768
          %v1808 = vunpack.c.l.b16 %v1769
          %v1809 = vunpack.c.l.b16 %v1770
          %v1810 = vunpack.c.l.b16 %v1771
          %v1811 = vunpack.c.l.b16 %v1772
          %v1812 = vunpack.c.l.b16 %v1773
          %v1813 = vunpack.c.l.b16 %v1774
          %v1814 = vunpack.c.l.b16 %v1775
          %v1815 = vunpack.c.l.b16 %v1776
          %v1816 = vunpack.c.l.b16 %v1777
          %v1817 = vunpack.c.l.b16 %v1778
          %v1818 = vunpack.c.l.b16 %v1779
          %v1819 = vunpack.c.l.b16 %v1780
          %v1820 = vunpack.c.l.b16 %v1781
          %v1821 = vpack.c.b16 %v1806, %v1805
          %v1822 = vpack.c.b16 %v1808, %v1807
          %v1823 = vpack.c.b16 %v1810, %v1809
          %v1824 = vpack.c.b16 %v1812, %v1811
          %v1825 = vpack.c.b16 %v1814, %v1813
          %v1826 = vpack.c.b16 %v1816, %v1815
          %v1827 = vpack.c.b16 %v1818, %v1817
          %v1828 = vpack.c.b16 %v1820, %v1819
          %1837 = vmatprep.subr.bf16.mxu0 0
          %1838 = vmatpush1.bf16.msra.mxu0 %v1821
          %1839 = vmatprep.subr.bf16.mxu0 0
          %1840 = vmatpush1.bf16.msra.mxu0 %v1822
          %1841 = vmatprep.subr.bf16.mxu0 0
          %1842 = vmatpush1.bf16.msra.mxu0 %v1823
          %1843 = vmatprep.subr.bf16.mxu0 0
          %1844 = vmatpush1.bf16.msra.mxu0 %v1824
          %1845 = vmatprep.subr.bf16.mxu0 0
          %1846 = vmatpush1.bf16.msra.mxu0 %v1825
          %1847 = vmatprep.subr.bf16.mxu0 0
          %1848 = vmatpush1.bf16.msra.mxu0 %v1826
          %1849 = vmatprep.subr.bf16.mxu0 0
          %1850 = vmatpush1.bf16.msra.mxu0 %v1827
          %1851 = vmatprep.subr.bf16.mxu0 0
          %1852 = vmatpush1.bf16.msra.mxu0 %v1828
          %1853 = vmatprep.subr.bf16.mxu0 0
          %1854 = vmatpush1.bf16.msra.mxu0 0
          %1855 = vmatprep.subr.bf16.mxu0 0
          %1856 = vmatpush1.bf16.msra.mxu0 0
          %1857 = vmatprep.subr.bf16.mxu0 0
          %1858 = vmatpush1.bf16.msra.mxu0 0
          %1859 = vmatprep.subr.bf16.mxu0 0
          %1860 = vmatpush1.bf16.msra.mxu0 0
          %1861 = vmatprep.subr.bf16.mxu0 0
          %1862 = vmatpush1.bf16.msra.mxu0 0
          %1863 = vmatprep.subr.bf16.mxu0 0
          %1864 = vmatpush1.bf16.msra.mxu0 0
          %1865 = vmatprep.subr.bf16.mxu0 0
          %1866 = vmatpush1.bf16.msra.mxu0 0
          %1867 = vmatprep.subr.bf16.mxu0 0
          %1868 = vmatpush1.bf16.msra.mxu0 0
          %1869 = vmatprep.mubr.bf16.mxu0 0
          %1870 = vmatmul.mubr.bf16.gmra.mrb[0].mxu0 %v1765
          %v1871 = vpop.f32.mrb[0].mxu0
          %v1872 = vadd.f32 %v1787, %v1871
          %v1873 = vpop.f32.mrb[0].mxu0
          %v1874 = vpop.f32.mrb[0].mxu0
          %v1875 = vpop.f32.mrb[0].mxu0
          %1876 = vdwg.mxu0
          %1877 = vst [vmem:[%s6] sm:$0xff] %v1872
        $region60: #{lstm_forward.1} parent=43 // pred_fallthru
          _
        // Predicated region
        $region61: #{lstm_forward.1} parent=43 // pred_check
          %p1878 = pneg %p163
        $region62: #{lstm_forward.1} parent=43 // pred_check_branch
          %1880 = sbr.rel (%p1878) target = $region64
        $region63: #{lstm_forward.1} parent=43 // pred_region
          _
        $region64: #{lstm_forward.1} parent=43 // pred_fallthru
          _
        // Predicated region
        $region65: #{lstm_forward.1} parent=43 // pred_check
          %p1881 = pneg %p163
        $region66: #{lstm_forward.1} parent=43 // pred_check_branch
          %1883 = sbr.rel (%p1881) target = $region68
        $region67: #{lstm_forward.1} parent=43 // pred_region
          _
        $region68: #{lstm_forward.1} parent=43 // pred_fallthru
          _
      $region44: #{lstm_forward.1} parent=5 // pred_fallthru
        _
      %p1884 = scmp.le.s32.totalorder 2, %s14
      // Predicated region
      $region69: #{lstm_forward.1} parent=5 // pred_check
        %p1885 = pneg %p1884
      $region70: #{lstm_forward.1} parent=5 // pred_check_branch
        %1887 = sbr.rel (%p1885) target = $region72
      $region71: #{lstm_forward.1} parent=5 // pred_region
        %s1888 = ssub.s32 %s14, 2
      $region72: #{lstm_forward.1} parent=5 // pred_fallthru
        _
    $region6: #{lstm_forward.1} parent=1 // loop_footer
      %s18 = sadd.s32 1, %s14
    $region7: #{lstm_forward.1} parent=1 // loop_footer_branch
      %13 = sbr.rel target = $region3
    $region8: #{lstm_forward.1} parent=1 // loop_exit
      _
    %1889 = vsyncpa [#allocation5], 1
    %s1890 = scalar_lea.sflag [#allocation5], 1
    %1891 = vsyncpa %s1890, 1
    %1892 = vsyncpa [#allocation7], 1

</llo_original>
